<compile_context>
chip_gen: v5e
topology: v5e:2x2
jax: 0.10.0
libtpu: 0.0.40
codegen_flags: <defaults>
</compile_context>

<pallas_src>
import functools

import jax
import jax.numpy as jnp
from jax import lax
from jax.experimental import pallas as pl
from jax.experimental.pallas import tpu as pltpu

LANE = 128


def _make_kernel(H, W, TH, C):
    """Builds the BasicBlock kernel for a (TH x W) output tile, C = padded channels."""

    def kernel(x_ref, w1_ref, w2_ref, bn_ref, out_ref):
        # x_ref  : (1, H+4, W+2, C)  input, 2-row / 1-col zero pad, channel-padded, f32
        # w1_ref : (9*C, C) bf16     conv1 weights, row index = (kh*3+kw)*C + cin
        # w2_ref : (9*C, C) bf16     conv2 weights
        # bn_ref : (4, C)   f32      rows = [s1, b1, s2, b2] (folded BN)
        # out_ref: (1, TH, W, C)
        i = pl.program_id(1)
        r0 = pl.multiple_of(i * TH, TH)  # start row of this tile in pad-2 coords

        # ---------- conv1 on TH+2 extended rows: single deep matmul ----------
        # Extended output row l corresponds to global output row (r0 - 1 + l);
        # it needs pad-2 input rows [r0 + l, r0 + l + 2].
        xwin = x_ref[0, pl.ds(r0, TH + 4), :, :].astype(jnp.bfloat16)  # (TH+4, W+2, C)
        cols = []
        for kh in range(3):
            for kw in range(3):
                cols.append(
                    xwin[kh:kh + TH + 2, kw:kw + W, :].reshape((TH + 2) * W, C))
        a1 = jnp.concatenate(cols, axis=-1)                    # ((TH+2)*W, 9C) bf16
        h1 = jnp.dot(a1, w1_ref[...], preferred_element_type=jnp.float32)
        h1 = h1.reshape(TH + 2, W, C)

        s1 = bn_ref[0:1, :]
        b1 = bn_ref[1:2, :]
        h1 = jnp.maximum(h1 * s1 + b1, 0.0)                    # bn1 + relu (f32)

        # Rows that fall outside [0, H) are conv2's zero padding -> mask them.
        grow = lax.broadcasted_iota(jnp.int32, (TH + 2, W, C), 0) + (r0 - 1)
        h1 = jnp.where((grow >= 0) & (grow < H), h1, 0.0)

        # ---------- conv2: W halo via value concat, single deep matmul ----------
        h1 = h1.astype(jnp.bfloat16)
        zcol = jnp.zeros((TH + 2, 1, C), jnp.bfloat16)
        h1p = jnp.concatenate([zcol, h1, zcol], axis=1)        # (TH+2, W+2, C)
        cols2 = []
        for kh in range(3):
            for kw in range(3):
                cols2.append(h1p[kh:kh + TH, kw:kw + W, :].reshape(TH * W, C))
        a2 = jnp.concatenate(cols2, axis=-1)                   # (TH*W, 9C) bf16
        h2 = jnp.dot(a2, w2_ref[...], preferred_element_type=jnp.float32)
        h2 = h2.reshape(TH, W, C)

        s2 = bn_ref[2:3, :]
        b2 = bn_ref[3:4, :]
        h2 = h2 * s2 + b2                                      # bn2 (f32)

        # ---------- identity residual + relu ----------
        res = x_ref[0, pl.ds(r0 + 2, TH), 1:1 + W, :]          # (TH, W, C) f32
        out_ref[0] = jnp.maximum(h2 + res, 0.0).astype(out_ref.dtype)

    return kernel


def basic_block_pallas(x_nchw, w1_oihw, w2_oihw, s1, b1, s2, b2, *, tile_h=8):
    """x_nchw: (N, C, H, W) float32. Returns (N, C, H, W). stride=1, dilation=1."""
    N, Cin, H, W = x_nchw.shape
    Cout = w1_oihw.shape[0]
    assert Cin == Cout, "identity residual requires inplanes == planes"

    Cpad = max(LANE, ((max(Cin, Cout) + LANE - 1) // LANE) * LANE)
    TH = tile_h if (H % tile_h == 0) else H
    nh = H // TH

    # NCHW -> NHWC, zero-pad: 2 rows top/bottom, 1 col left/right, channels -> Cpad.
    # (Single fused XLA copy; external contract stays NCHW.)
    x = jnp.transpose(x_nchw, (0, 2, 3, 1))
    x = jnp.pad(x, ((0, 0), (2, 2), (1, 1), (0, Cpad - Cin)))

    def prep_w(w):
        # OIHW -> (kh, kw, cin, cout), zero-pad channels, flatten K = 9*Cpad, bf16.
        khw = jnp.transpose(w, (2, 3, 1, 0))
        khw = jnp.pad(khw, ((0, 0), (0, 0),
                            (0, Cpad - w.shape[1]), (0, Cpad - w.shape[0])))
        return khw.reshape(9 * Cpad, Cpad).astype(jnp.bfloat16)

    w1k = prep_w(w1_oihw)
    w2k = prep_w(w2_oihw)

    bn = jnp.stack([
        jnp.pad(s1, (0, Cpad - Cout)), jnp.pad(b1, (0, Cpad - Cout)),
        jnp.pad(s2, (0, Cpad - Cout)), jnp.pad(b2, (0, Cpad - Cout)),
    ]).astype(jnp.float32)

    kernel = _make_kernel(H, W, TH, Cpad)

    out_nhwc = pl.pallas_call(
        kernel,
        out_shape=jax.ShapeDtypeStruct((N, H, W, Cpad), x_nchw.dtype),
        grid=(N, nh),
        in_specs=[
            # Per-image padded input: block index constant along the H-tile axis,
            # so it is fetched once per image and reused across tiles.
            pl.BlockSpec((1, H + 4, W + 2, Cpad), lambda n, i: (n, 0, 0, 0)),
            pl.BlockSpec((9 * Cpad, Cpad), lambda n, i: (0, 0)),
            pl.BlockSpec((9 * Cpad, Cpad), lambda n, i: (0, 0)),
            pl.BlockSpec((4, Cpad), lambda n, i: (0, 0)),
        ],
        out_specs=pl.BlockSpec((1, TH, W, Cpad), lambda n, i: (n, i, 0, 0)),
        compiler_params=pltpu.CompilerParams(
            dimension_semantics=("parallel", "parallel"),
            vmem_limit_bytes=32 * 1024 * 1024,
        ),
    )(x, w1k, w2k, bn)

    return jnp.transpose(out_nhwc[..., :Cout], (0, 3, 1, 2))  # back to NCHW


def basic_block_reference(x, w1, w2, s1, b1, s2, b2):
    """Pure-JAX reference (NCHW, PyTorch forward with eval BN).

    Conv operands cast to bf16 with f32 accumulation to mirror the kernel's
    MXU precision, everything else in f32."""
    dn = ('NCHW', 'OIHW', 'NCHW')

    def conv(inp, w):
        return lax.conv_general_dilated(
            inp.astype(jnp.bfloat16), w.astype(jnp.bfloat16),
            (1, 1), ((1, 1), (1, 1)), dimension_numbers=dn,
            preferred_element_type=jnp.float32)

    out = conv(x, w1)
    out = out * s1[None, :, None, None] + b1[None, :, None, None]
    out = jnp.maximum(out, 0.0)
    out = conv(out, w2)
    out = out * s2[None, :, None, None] + b2[None, :, None, None]
    out = out + x
    return jnp.maximum(out, 0.0)


if __name__ == "__main__":
    key = jax.random.PRNGKey(0)
    N, C, H, W = 2, 4, 16, 16      # inplanes = planes = 4, stride=1, dilation=1
    planes = C
    eps = 1e-5

    ks = jax.random.split(key, 8)
    x = jax.random.normal(ks[0], (N, C, H, W), jnp.float32)
    w1 = 0.1 * jax.random.normal(ks[1], (planes, C, 3, 3), jnp.float32)       # OIHW
    w2 = 0.1 * jax.random.normal(ks[2], (planes, planes, 3, 3), jnp.float32)  # OIHW

    # BatchNorm (eval mode) parameters.
    gamma1 = 1.0 + 0.1 * jax.random.normal(ks[3], (planes,), jnp.float32)
    beta1 = 0.1 * jax.random.normal(ks[4], (planes,), jnp.float32)
    mean1 = 0.05 * jax.random.normal(ks[5], (planes,), jnp.float32)
    var1 = jnp.abs(1.0 + 0.1 * jax.random.normal(ks[6], (planes,), jnp.float32))
    gamma2 = jnp.ones((planes,), jnp.float32)
    beta2 = jnp.zeros((planes,), jnp.float32)
    mean2 = 0.05 * jax.random.normal(ks[7], (planes,), jnp.float32)
    var2 = jnp.ones((planes,), jnp.float32)

    # Fold BN into per-channel scale/bias.
    s1 = gamma1 / jnp.sqrt(var1 + eps)
    b1 = beta1 - mean1 * s1
    s2 = gamma2 / jnp.sqrt(var2 + eps)
    b2 = beta2 - mean2 * s2

    run = jax.jit(functools.partial(basic_block_pallas, tile_h=8))
    y = run(x, w1, w2, s1, b1, s2, b2)
    jax.block_until_ready(y)

    y_ref = basic_block_reference(x, w1, w2, s1, b1, s2, b2)
    assert y.shape == (N, C, H, W)
    max_err = jnp.max(jnp.abs(y - y_ref))
    assert jnp.allclose(y, y_ref, atol=1e-2, rtol=1e-2), f"max err {max_err}"

    print("KERNEL_OK")
</pallas_src>

<mosaic_0001>
module attributes {stable_mosaic.version = 11 : i64} {
  func.func @kernel(%arg0: i32, %arg1: i32, %arg2: memref<1x20x18x128xf32, #tpu.memory_space<vmem>>, %arg3: memref<1152x128xbf16, #tpu.memory_space<vmem>>, %arg4: memref<1152x128xbf16, #tpu.memory_space<vmem>>, %arg5: memref<4x128xf32, #tpu.memory_space<vmem>>, %arg6: memref<1x8x16x128xf32, #tpu.memory_space<vmem>>) attributes {dimension_semantics = [#tpu.dimension_semantics<parallel>, #tpu.dimension_semantics<parallel>], iteration_bounds = array<i64: 2, 2>, scalar_prefetch = 0 : i64, scratch_operands = 0 : i64, tpu.core_type = #tpu.core_type<tc>, window_params = [{transform_indices = @transform_0, window_bounds = array<i64: 1, 20, 18, 128>}, {pipeline_mode = #tpu.pipeline_mode<synchronous>, transform_indices = @transform_1, window_bounds = array<i64: 1152, 128>}, {pipeline_mode = #tpu.pipeline_mode<synchronous>, transform_indices = @transform_2, window_bounds = array<i64: 1152, 128>}, {pipeline_mode = #tpu.pipeline_mode<synchronous>, transform_indices = @transform_3, window_bounds = array<i64: 4, 128>}, {transform_indices = @transform_4, window_bounds = array<i64: 1, 8, 16, 128>}]} {
    %c8_i32 = arith.constant 8 : i32
    %0 = arith.muli %arg1, %c8_i32 : i32
    %1 = tpu.assume_multiple %0, 8 : i32
    %c0 = arith.constant 0 : index
    %2 = arith.index_cast %1 : i32 to index
    %c0_0 = arith.constant 0 : index
    %c0_1 = arith.constant 0 : index
    %3 = vector.load %arg2[%c0, %2, %c0_0, %c0_1] : memref<1x20x18x128xf32, #tpu.memory_space<vmem>>, vector<1x12x18x128xf32>
    %4 = vector.shape_cast %3 : vector<1x12x18x128xf32> to vector<12x18x128xf32>
    %5 = arith.truncf %4 : vector<12x18x128xf32> to vector<12x18x128xbf16>
    %6 = vector.extract_strided_slice %5 {offsets = [0, 0, 0], sizes = [10, 16, 128], strides = [1, 1, 1]} : vector<12x18x128xbf16> to vector<10x16x128xbf16>
    %7 = vector.shape_cast %6 : vector<10x16x128xbf16> to vector<160x128xbf16>
    %8 = vector.extract_strided_slice %5 {offsets = [0, 1, 0], sizes = [10, 16, 128], strides = [1, 1, 1]} : vector<12x18x128xbf16> to vector<10x16x128xbf16>
    %9 = vector.shape_cast %8 : vector<10x16x128xbf16> to vector<160x128xbf16>
    %10 = vector.extract_strided_slice %5 {offsets = [0, 2, 0], sizes = [10, 16, 128], strides = [1, 1, 1]} : vector<12x18x128xbf16> to vector<10x16x128xbf16>
    %11 = vector.shape_cast %10 : vector<10x16x128xbf16> to vector<160x128xbf16>
    %12 = vector.extract_strided_slice %5 {offsets = [1, 0, 0], sizes = [10, 16, 128], strides = [1, 1, 1]} : vector<12x18x128xbf16> to vector<10x16x128xbf16>
    %13 = vector.shape_cast %12 : vector<10x16x128xbf16> to vector<160x128xbf16>
    %14 = vector.extract_strided_slice %5 {offsets = [1, 1, 0], sizes = [10, 16, 128], strides = [1, 1, 1]} : vector<12x18x128xbf16> to vector<10x16x128xbf16>
    %15 = vector.shape_cast %14 : vector<10x16x128xbf16> to vector<160x128xbf16>
    %16 = vector.extract_strided_slice %5 {offsets = [1, 2, 0], sizes = [10, 16, 128], strides = [1, 1, 1]} : vector<12x18x128xbf16> to vector<10x16x128xbf16>
    %17 = vector.shape_cast %16 : vector<10x16x128xbf16> to vector<160x128xbf16>
    %18 = vector.extract_strided_slice %5 {offsets = [2, 0, 0], sizes = [10, 16, 128], strides = [1, 1, 1]} : vector<12x18x128xbf16> to vector<10x16x128xbf16>
    %19 = vector.shape_cast %18 : vector<10x16x128xbf16> to vector<160x128xbf16>
    %20 = vector.extract_strided_slice %5 {offsets = [2, 1, 0], sizes = [10, 16, 128], strides = [1, 1, 1]} : vector<12x18x128xbf16> to vector<10x16x128xbf16>
    %21 = vector.shape_cast %20 : vector<10x16x128xbf16> to vector<160x128xbf16>
    %22 = vector.extract_strided_slice %5 {offsets = [2, 2, 0], sizes = [10, 16, 128], strides = [1, 1, 1]} : vector<12x18x128xbf16> to vector<10x16x128xbf16>
    %23 = vector.shape_cast %22 : vector<10x16x128xbf16> to vector<160x128xbf16>
    %24 = tpu.concatenate %7, %9, %11, %13, %15, %17, %19, %21, %23 in 1 : vector<160x128xbf16>, vector<160x128xbf16>, vector<160x128xbf16>, vector<160x128xbf16>, vector<160x128xbf16>, vector<160x128xbf16>, vector<160x128xbf16>, vector<160x128xbf16>, vector<160x128xbf16> -> vector<160x1152xbf16>
    %c0_2 = arith.constant 0 : index
    %c0_3 = arith.constant 0 : index
    %25 = vector.load %arg3[%c0_2, %c0_3] : memref<1152x128xbf16, #tpu.memory_space<vmem>>, vector<1152x128xbf16>
    %cst = arith.constant dense<0.000000e+00> : vector<160x128xf32>
    %26 = tpu.matmul %24, %25, %cst {dimension_numbers = #tpu.dot_dimension_numbers<[1], [0], [0], [1], [0, 0, 1, 1], [], []>} : vector<160x1152xbf16>, vector<1152x128xbf16>, vector<160x128xf32> -> vector<160x128xf32>
    %27 = vector.shape_cast %26 : vector<160x128xf32> to vector<10x16x128xf32>
    %c0_4 = arith.constant 0 : index
    %c0_5 = arith.constant 0 : index
    %28 = vector.load %arg5[%c0_4, %c0_5] : memref<4x128xf32, #tpu.memory_space<vmem>>, vector<1x128xf32>
    %c1 = arith.constant 1 : index
    %c0_6 = arith.constant 0 : index
    %29 = vector.load %arg5[%c1, %c0_6] : memref<4x128xf32, #tpu.memory_space<vmem>>, vector<1x128xf32>
    %30 = vector.shape_cast %28 : vector<1x128xf32> to vector<1x1x128xf32>
    %31 = vector.broadcast %30 : vector<1x1x128xf32> to vector<10x16x128xf32>
    %32 = arith.mulf %27, %31 : vector<10x16x128xf32>
    %33 = vector.shape_cast %29 : vector<1x128xf32> to vector<1x1x128xf32>
    %34 = vector.broadcast %33 : vector<1x1x128xf32> to vector<10x16x128xf32>
    %35 = arith.addf %32, %34 : vector<10x16x128xf32>
    %cst_7 = arith.constant 0.000000e+00 : f32
    %36 = vector.broadcast %cst_7 : f32 to vector<10x16x128xf32>
    %37 = arith.maximumf %35, %36 : vector<10x16x128xf32>
    %38 = tpu.iota {dimensions = array<i32: 0>} : vector<10x16x128xi32>
    %c1_i32 = arith.constant 1 : i32
    %39 = arith.subi %1, %c1_i32 : i32
    %40 = vector.broadcast %39 : i32 to vector<10x16x128xi32>
    %41 = arith.addi %38, %40 : vector<10x16x128xi32>
    %c0_i32 = arith.constant 0 : i32
    %42 = vector.broadcast %c0_i32 : i32 to vector<10x16x128xi32>
    %43 = arith.cmpi sge, %41, %42 : vector<10x16x128xi32>
    %c16_i32 = arith.constant 16 : i32
    %44 = vector.broadcast %c16_i32 : i32 to vector<10x16x128xi32>
    %45 = arith.cmpi slt, %41, %44 : vector<10x16x128xi32>
    %46 = arith.andi %43, %45 : vector<10x16x128xi1>
    %cst_8 = arith.constant 0.000000e+00 : f32
    %47 = vector.broadcast %cst_8 : f32 to vector<10x16x128xf32>
    %48 = arith.select %46, %37, %47 : vector<10x16x128xi1>, vector<10x16x128xf32>
    %49 = arith.truncf %48 : vector<10x16x128xf32> to vector<10x16x128xbf16>
    %cst_9 = arith.constant 0.000000e+00 : bf16
    %50 = vector.broadcast %cst_9 : bf16 to vector<10x1x128xbf16>
    %51 = tpu.concatenate %50, %49, %50 in 1 : vector<10x1x128xbf16>, vector<10x16x128xbf16>, vector<10x1x128xbf16> -> vector<10x18x128xbf16>
    %52 = vector.extract_strided_slice %51 {offsets = [0, 0, 0], sizes = [8, 16, 128], strides = [1, 1, 1]} : vector<10x18x128xbf16> to vector<8x16x128xbf16>
    %53 = vector.shape_cast %52 : vector<8x16x128xbf16> to vector<128x128xbf16>
    %54 = vector.extract_strided_slice %51 {offsets = [0, 1, 0], sizes = [8, 16, 128], strides = [1, 1, 1]} : vector<10x18x128xbf16> to vector<8x16x128xbf16>
    %55 = vector.shape_cast %54 : vector<8x16x128xbf16> to vector<128x128xbf16>
    %56 = vector.extract_strided_slice %51 {offsets = [0, 2, 0], sizes = [8, 16, 128], strides = [1, 1, 1]} : vector<10x18x128xbf16> to vector<8x16x128xbf16>
    %57 = vector.shape_cast %56 : vector<8x16x128xbf16> to vector<128x128xbf16>
    %58 = vector.extract_strided_slice %51 {offsets = [1, 0, 0], sizes = [8, 16, 128], strides = [1, 1, 1]} : vector<10x18x128xbf16> to vector<8x16x128xbf16>
    %59 = vector.shape_cast %58 : vector<8x16x128xbf16> to vector<128x128xbf16>
    %60 = vector.extract_strided_slice %51 {offsets = [1, 1, 0], sizes = [8, 16, 128], strides = [1, 1, 1]} : vector<10x18x128xbf16> to vector<8x16x128xbf16>
    %61 = vector.shape_cast %60 : vector<8x16x128xbf16> to vector<128x128xbf16>
    %62 = vector.extract_strided_slice %51 {offsets = [1, 2, 0], sizes = [8, 16, 128], strides = [1, 1, 1]} : vector<10x18x128xbf16> to vector<8x16x128xbf16>
    %63 = vector.shape_cast %62 : vector<8x16x128xbf16> to vector<128x128xbf16>
    %64 = vector.extract_strided_slice %51 {offsets = [2, 0, 0], sizes = [8, 16, 128], strides = [1, 1, 1]} : vector<10x18x128xbf16> to vector<8x16x128xbf16>
    %65 = vector.shape_cast %64 : vector<8x16x128xbf16> to vector<128x128xbf16>
    %66 = vector.extract_strided_slice %51 {offsets = [2, 1, 0], sizes = [8, 16, 128], strides = [1, 1, 1]} : vector<10x18x128xbf16> to vector<8x16x128xbf16>
    %67 = vector.shape_cast %66 : vector<8x16x128xbf16> to vector<128x128xbf16>
    %68 = vector.extract_strided_slice %51 {offsets = [2, 2, 0], sizes = [8, 16, 128], strides = [1, 1, 1]} : vector<10x18x128xbf16> to vector<8x16x128xbf16>
    %69 = vector.shape_cast %68 : vector<8x16x128xbf16> to vector<128x128xbf16>
    %70 = tpu.concatenate %53, %55, %57, %59, %61, %63, %65, %67, %69 in 1 : vector<128x128xbf16>, vector<128x128xbf16>, vector<128x128xbf16>, vector<128x128xbf16>, vector<128x128xbf16>, vector<128x128xbf16>, vector<128x128xbf16>, vector<128x128xbf16>, vector<128x128xbf16> -> vector<128x1152xbf16>
    %c0_10 = arith.constant 0 : index
    %c0_11 = arith.constant 0 : index
    %71 = vector.load %arg4[%c0_10, %c0_11] : memref<1152x128xbf16, #tpu.memory_space<vmem>>, vector<1152x128xbf16>
    %cst_12 = arith.constant dense<0.000000e+00> : vector<128x128xf32>
    %72 = tpu.matmul %70, %71, %cst_12 {dimension_numbers = #tpu.dot_dimension_numbers<[1], [0], [0], [1], [0, 0, 1, 1], [], []>} : vector<128x1152xbf16>, vector<1152x128xbf16>, vector<128x128xf32> -> vector<128x128xf32>
    %73 = vector.shape_cast %72 : vector<128x128xf32> to vector<8x16x128xf32>
    %c2 = arith.constant 2 : index
    %c0_13 = arith.constant 0 : index
    %74 = vector.load %arg5[%c2, %c0_13] : memref<4x128xf32, #tpu.memory_space<vmem>>, vector<1x128xf32>
    %c3 = arith.constant 3 : index
    %c0_14 = arith.constant 0 : index
    %75 = vector.load %arg5[%c3, %c0_14] : memref<4x128xf32, #tpu.memory_space<vmem>>, vector<1x128xf32>
    %76 = vector.shape_cast %74 : vector<1x128xf32> to vector<1x1x128xf32>
    %77 = vector.broadcast %76 : vector<1x1x128xf32> to vector<8x16x128xf32>
    %78 = arith.mulf %73, %77 : vector<8x16x128xf32>
    %79 = vector.shape_cast %75 : vector<1x128xf32> to vector<1x1x128xf32>
    %80 = vector.broadcast %79 : vector<1x1x128xf32> to vector<8x16x128xf32>
    %81 = arith.addf %78, %80 : vector<8x16x128xf32>
    %c2_i32 = arith.constant 2 : i32
    %82 = arith.addi %1, %c2_i32 : i32
    %c0_15 = arith.constant 0 : index
    %83 = arith.index_cast %82 : i32 to index
    %c1_16 = arith.constant 1 : index
    %c0_17 = arith.constant 0 : index
    %84 = vector.load %arg2[%c0_15, %83, %c1_16, %c0_17] : memref<1x20x18x128xf32, #tpu.memory_space<vmem>>, vector<1x8x16x128xf32>
    %85 = vector.shape_cast %84 : vector<1x8x16x128xf32> to vector<8x16x128xf32>
    %86 = arith.addf %81, %85 : vector<8x16x128xf32>
    %cst_18 = arith.constant 0.000000e+00 : f32
    %87 = vector.broadcast %cst_18 : f32 to vector<8x16x128xf32>
    %88 = arith.maximumf %86, %87 : vector<8x16x128xf32>
    %c0_19 = arith.constant 0 : index
    %c0_20 = arith.constant 0 : index
    %c0_21 = arith.constant 0 : index
    %c0_22 = arith.constant 0 : index
    %89 = vector.load %arg6[%c0_19, %c0_20, %c0_21, %c0_22] : memref<1x8x16x128xf32, #tpu.memory_space<vmem>>, vector<1x8x16x128xf32>
    %90 = vector.shape_cast %89 : vector<1x8x16x128xf32> to vector<8x16x128xf32>
    %91 = vector.shape_cast %88 : vector<8x16x128xf32> to vector<1x8x16x128xf32>
    tpu.vector_store %arg6[%c0_19, %c0_20, %c0_21, %c0_22], %91 {strides = array<i32>} : memref<1x8x16x128xf32, #tpu.memory_space<vmem>>, vector<1x8x16x128xf32>,
    return
  }
  func.func @transform_0(%arg0: i32, %arg1: i32) -> (i32, i32, i32, i32) {
    %c0_i32 = arith.constant 0 : i32
    %c0_i32_0 = arith.constant 0 : i32
    %c0_i32_1 = arith.constant 0 : i32
    %c0_i32_2 = arith.constant 0 : i32
    return %arg0, %c0_i32, %c0_i32_0, %c0_i32_1 : i32, i32, i32, i32
  }
  func.func @transform_1(%arg0: i32, %arg1: i32) -> (i32, i32) {
    %c0_i32 = arith.constant 0 : i32
    %c0_i32_0 = arith.constant 0 : i32
    %c0_i32_1 = arith.constant 0 : i32
    return %c0_i32, %c0_i32_0 : i32, i32
  }
  func.func @transform_2(%arg0: i32, %arg1: i32) -> (i32, i32) {
    %c0_i32 = arith.constant 0 : i32
    %c0_i32_0 = arith.constant 0 : i32
    %c0_i32_1 = arith.constant 0 : i32
    return %c0_i32, %c0_i32_0 : i32, i32
  }
  func.func @transform_3(%arg0: i32, %arg1: i32) -> (i32, i32) {
    %c0_i32 = arith.constant 0 : i32
    %c0_i32_0 = arith.constant 0 : i32
    %c0_i32_1 = arith.constant 0 : i32
    return %c0_i32, %c0_i32_0 : i32, i32
  }
  func.func @transform_4(%arg0: i32, %arg1: i32) -> (i32, i32, i32, i32) {
    %c0_i32 = arith.constant 0 : i32
    %c0_i32_0 = arith.constant 0 : i32
    %c0_i32_1 = arith.constant 0 : i32
    return %arg0, %arg1, %c0_i32, %c0_i32_0 : i32, i32, i32, i32
  }
}

</mosaic_0001>

<llo_original>
// kernel: basic_block_pallas.1
$region0: #{basic_block_pallas.1}
  #allocation0 [shape = 'u32[]', space=smem, size = 0x4, offset = 0x4, fixed_abs, tag = 'smem constant byte address 0x4 - core index']
  #allocation1 [shape = 'u32[72,128]{1,0:T(1,128)}', space=vmem, size = 0x9000, scoped, tag = 'internal scratch']
  %s0 = inlined_call_operand.vmem [shape: f32[2,20,18,128], index: 0, kind: input, shape index: {}]
  %s1 = inlined_call_operand.vmem [shape: bf16[1152,128], index: 1, kind: input, shape index: {}]
  %s2 = inlined_call_operand.vmem [shape: bf16[1152,128], index: 2, kind: input, shape index: {}]
  %s3 = inlined_call_operand.vmem [shape: f32[4,128], index: 3, kind: input, shape index: {}]
  %s4 = inlined_call_operand.vmem [shape: f32[2,16,16,128], index: 4, kind: output, shape index: {}]
  %s5 = sld [smem:[#allocation0]]
  $region49: #{basic_block_pallas.1} parent=0
    _
  %s7 = ssub.s32 1, %s5
  %s8 = scalar_select 0, %s7, %s5
  loop: start=0, step=1, limit=6
  $region2: #{basic_block_pallas.1} parent=0 // loop_pre_header
    _
  $region3: #{basic_block_pallas.1} parent=0 // loop_header
    %s10 = sphi 0, %s14
    %p11 = scmp.ge.s32.totalorder %s10, 6
    %s17 = sphi 0, %s29
    %s18 = sphi 0, %s25
    %s19 = sphi 0, %s17
    %s20 = sphi 0, %s18
    %s21 = sphi 0, %s19
    %s22 = sphi 0, %s20
    %s32 = sphi 0, %s34
    %s35 = sphi 0, %s32
    %s36 = sphi 0, %s35
    %s52 = sphi 0, %s36
    %s56 = sphi 0, %s56
    %s58 = sphi 0, %s56
    %s59 = sphi 0, %s58
    %s73 = sphi 0, %s59
    %s77 = sphi 0, %s77
    %s79 = sphi 0, %s77
    %s80 = sphi 0, %s79
    %s94 = sphi 0, %s80
    %s98 = sphi 0, %s98
    %s100 = sphi 0, %s98
    %s101 = sphi 0, %s100
    %s115 = sphi 0, %s101
    %s123 = sphi 0, %s125
    %s126 = sphi 0, %s123
    %s127 = sphi 0, %s126
    %s143 = sphi 0, %s127
  $region4: #{basic_block_pallas.1} parent=0 // loop_header_branch
    %13 = sbr.rel (%p11) target = $region8
  $region5: #{basic_block_pallas.1} parent=0 // loop_body
    %s15 = ssub.s32 %s10, 1
    %s16 = ssub.s32 %s10, 2
    %s23 = sadd.s32 1, %s18
    %p24 = scmp.ge.s32.totalorder %s23, 2
    %s25 = scalar_select %p24, 0, %s23
    %s26 = sadd.s32 1, %s17
    %s27 = scalar_select %p24, %s26, %s17
    %p28 = scmp.ge.s32.totalorder %s27, 2
    %s29 = scalar_select %p28, 0, %s27
    %s30 = ssub.s32 %s17, %s29
    %p31 = scmp.eq.s32.totalorder %s30, 0
    %s33 = sadd.s32 %s32, 1
    %s34 = scalar_select %p31, %s32, %s33
    %p37 = pneg %p31
    %p38 = scmp.eq.s32.totalorder %s10, 3
    %p39 = por %p37, %p38
    %p40 = scmp.ne.s32.totalorder %s32, %s35
    %p41 = scmp.eq.s32.totalorder %s10, 0
    %p42 = por %p40, %p41
    %p43 = scmp.ne.s32.totalorder %s32, %s35
    %p44 = scmp.eq.s32.totalorder %s15, 3
    %p45 = por %p43, %p44
    %p46 = scmp.ne.s32.totalorder %s35, %s36
    %p47 = scmp.eq.s32.totalorder %s15, 0
    %p48 = por %p46, %p47
    %p49 = scmp.ne.s32.totalorder %s35, %s36
    %p50 = scmp.eq.s32.totalorder %s16, 3
    %p51 = por %p49, %p50
    %p53 = scmp.ne.s32.totalorder %s36, %s52
    %p54 = scmp.eq.s32.totalorder %s16, 0
    %p55 = por %p53, %p54
    %s57 = sadd.s32 %s56, 1
    %p60 = scmp.eq.s32.totalorder %s10, 3
    %p61 = scmp.ne.s32.totalorder %s56, %s58
    %p62 = scmp.eq.s32.totalorder %s10, 0
    %p63 = por %p61, %p62
    %p64 = scmp.ne.s32.totalorder %s56, %s58
    %p65 = scmp.eq.s32.totalorder %s15, 3
    %p66 = por %p64, %p65
    %p67 = scmp.ne.s32.totalorder %s58, %s59
    %p68 = scmp.eq.s32.totalorder %s15, 0
    %p69 = por %p67, %p68
    %p70 = scmp.ne.s32.totalorder %s58, %s59
    %p71 = scmp.eq.s32.totalorder %s16, 3
    %p72 = por %p70, %p71
    %p74 = scmp.ne.s32.totalorder %s59, %s73
    %p75 = scmp.eq.s32.totalorder %s16, 0
    %p76 = por %p74, %p75
    %s78 = sadd.s32 %s77, 1
    %p81 = scmp.eq.s32.totalorder %s10, 3
    %p82 = scmp.ne.s32.totalorder %s77, %s79
    %p83 = scmp.eq.s32.totalorder %s10, 0
    %p84 = por %p82, %p83
    %p85 = scmp.ne.s32.totalorder %s77, %s79
    %p86 = scmp.eq.s32.totalorder %s15, 3
    %p87 = por %p85, %p86
    %p88 = scmp.ne.s32.totalorder %s79, %s80
    %p89 = scmp.eq.s32.totalorder %s15, 0
    %p90 = por %p88, %p89
    %p91 = scmp.ne.s32.totalorder %s79, %s80
    %p92 = scmp.eq.s32.totalorder %s16, 3
    %p93 = por %p91, %p92
    %p95 = scmp.ne.s32.totalorder %s80, %s94
    %p96 = scmp.eq.s32.totalorder %s16, 0
    %p97 = por %p95, %p96
    %s99 = sadd.s32 %s98, 1
    %p102 = scmp.eq.s32.totalorder %s10, 3
    %p103 = scmp.ne.s32.totalorder %s98, %s100
    %p104 = scmp.eq.s32.totalorder %s10, 0
    %p105 = por %p103, %p104
    %p106 = scmp.ne.s32.totalorder %s98, %s100
    %p107 = scmp.eq.s32.totalorder %s15, 3
    %p108 = por %p106, %p107
    %p109 = scmp.ne.s32.totalorder %s100, %s101
    %p110 = scmp.eq.s32.totalorder %s15, 0
    %p111 = por %p109, %p110
    %p112 = scmp.ne.s32.totalorder %s100, %s101
    %p113 = scmp.eq.s32.totalorder %s16, 3
    %p114 = por %p112, %p113
    %p116 = scmp.ne.s32.totalorder %s101, %s115
    %p117 = scmp.eq.s32.totalorder %s16, 0
    %p118 = por %p116, %p117
    %s119 = ssub.s32 %s17, %s29
    %s120 = ssub.s32 %s18, %s25
    %s121 = sor.u32 %s119, %s120
    %p122 = scmp.eq.s32.totalorder %s121, 0
    %s124 = sadd.s32 %s123, 1
    %s125 = scalar_select %p122, %s123, %s124
    %p128 = pneg %p122
    %p129 = scmp.eq.s32.totalorder %s10, 3
    %p130 = por %p128, %p129
    %p131 = scmp.ne.s32.totalorder %s123, %s126
    %p132 = scmp.eq.s32.totalorder %s10, 0
    %p133 = por %p131, %p132
    %p134 = scmp.ne.s32.totalorder %s123, %s126
    %p135 = scmp.eq.s32.totalorder %s15, 3
    %p136 = por %p134, %p135
    %p137 = scmp.ne.s32.totalorder %s126, %s127
    %p138 = scmp.eq.s32.totalorder %s15, 0
    %p139 = por %p137, %p138
    %p140 = scmp.ne.s32.totalorder %s126, %s127
    %p141 = scmp.eq.s32.totalorder %s16, 3
    %p142 = por %p140, %p141
    %p144 = scmp.ne.s32.totalorder %s127, %s143
    %p145 = scmp.eq.s32.totalorder %s16, 0
    %p146 = por %p144, %p145
    %p147 = scmp.le.s32.totalorder 1, %s10
    %p148 = scmp.lt.s32.totalorder %s10, 5
    %p149 = pnand %p147, %p148
    %p150 = pneg %p149
    // Predicated region
    $region9: #{basic_block_pallas.1} parent=5 // pred_check
      _
    $region10: #{basic_block_pallas.1} parent=5 // pred_check_branch
      %152 = sbr.rel (%p149) target = $region12
    $region11: #{basic_block_pallas.1} parent=5 // pred_region
      %s153 = ssub.s32 %s10, 1
      // Predicated region
      $region13: #{basic_block_pallas.1} parent=11 // pred_check
        %p154 = pneg %p69
      $region14: #{basic_block_pallas.1} parent=11 // pred_check_branch
        %156 = sbr.rel (%p154) target = $region16
      $region15: #{basic_block_pallas.1} parent=11 // pred_region
        _
      $region16: #{basic_block_pallas.1} parent=11 // pred_fallthru
        _
      // Predicated region
      $region17: #{basic_block_pallas.1} parent=11 // pred_check
        %p157 = pneg %p90
      $region18: #{basic_block_pallas.1} parent=11 // pred_check_branch
        %159 = sbr.rel (%p157) target = $region20
      $region19: #{basic_block_pallas.1} parent=11 // pred_region
        _
      $region20: #{basic_block_pallas.1} parent=11 // pred_fallthru
        _
      // Predicated region
      $region21: #{basic_block_pallas.1} parent=11 // pred_check
        %p160 = pneg %p111
      $region22: #{basic_block_pallas.1} parent=11 // pred_check_branch
        %162 = sbr.rel (%p160) target = $region24
      $region23: #{basic_block_pallas.1} parent=11 // pred_region
        _
      $region24: #{basic_block_pallas.1} parent=11 // pred_fallthru
        _
    $region12: #{basic_block_pallas.1} parent=5 // pred_fallthru
      _
    %p163 = scmp.lt.s32.totalorder %s10, 4
    // Predicated region
    $region25: #{basic_block_pallas.1} parent=5 // pred_check
      %p164 = pneg %p163
    $region26: #{basic_block_pallas.1} parent=5 // pred_check_branch
      %166 = sbr.rel (%p164) target = $region28
    $region27: #{basic_block_pallas.1} parent=5 // pred_region
      // Predicated region
      $region29: #{basic_block_pallas.1} parent=27 // pred_check
        %p167 = pneg %p42
      $region30: #{basic_block_pallas.1} parent=27 // pred_check_branch
        %169 = sbr.rel (%p167) target = $region32
      $region31: #{basic_block_pallas.1} parent=27 // pred_region
        %p170 = scmp.lt.s32.totalorder %s17, 1
        %s171 = scalar_select %p170, %s17, 1
        %s172 = smul.addr %s171, 60
        %s173 = smul.addr %s172, 8
        %s174 = scalar_lea.vmem %s0, %s173
      $region32: #{basic_block_pallas.1} parent=27 // pred_fallthru
        _
    $region28: #{basic_block_pallas.1} parent=5 // pred_fallthru
      _
    %p175 = scmp.le.s32.totalorder 1, %s10
    %p176 = scmp.lt.s32.totalorder %s10, 5
    %p177 = pnand %p175, %p176
    %p178 = pneg %p177
    // Predicated region
    $region33: #{basic_block_pallas.1} parent=5 // pred_check
      _
    $region34: #{basic_block_pallas.1} parent=5 // pred_check_branch
      %180 = sbr.rel (%p177) target = $region36
    $region35: #{basic_block_pallas.1} parent=5 // pred_region
      %s181 = ssub.s32 %s10, 1
      %p182 = scmp.lt.s32.totalorder %s19, 1
      %s183 = scalar_select %p182, %s19, 1
      %s184 = smul.addr %s183, 60
      %s185 = smul.addr %s184, 8
      %s186 = scalar_lea.vmem %s0, %s185
      %p187 = pneg %p48
      %p188 = pneg %p45
      %p189 = pneg %p69
      %p190 = pneg %p66
      %p191 = pneg %p90
      %p192 = pneg %p87
      %p193 = pneg %p111
      %p194 = pneg %p108
      %p195 = pneg %p139
      %p196 = pneg %p136
      %s197 = smul.u32 8, %s20
      %p198 = scmp.lt.s32.totalorder %s19, 1
      %s199 = scalar_select %p198, %s19, 1
      %p200 = scmp.lt.s32.totalorder %s197, 15
      %s201 = scalar_select %p200, %s197, 15
      %s202 = smul.addr %s201, 2
      %s203 = smul.addr %s199, 32
      %s204 = sadd.s32 %s202, %s203
      %s205 = smul.addr %s204, 8
      %s206 = scalar_lea.vmem %s4, %s205
      %p207 = scmp.lt.s32.totalorder %s19, 1
      %s208 = scalar_select %p207, %s19, 1
      %s209 = smul.addr %s208, 60
      %s210 = smul.addr %s209, 8
      %s211 = scalar_lea.vmem %s0, %s210
      %s212 = smul.u32 8, %s20
      %p213 = scmp.lt.s32.totalorder %s19, 1
      %s214 = scalar_select %p213, %s19, 1
      %p215 = scmp.lt.s32.totalorder %s212, 15
      %s216 = scalar_select %p215, %s212, 15
      %s217 = smul.addr %s216, 2
      %s218 = smul.addr %s214, 32
      %s219 = sadd.s32 %s217, %s218
      %s220 = smul.addr %s219, 8
      %s221 = scalar_lea.vmem %s4, %s220
      %s222 = smul.u32 8, %s20
      %s224 = smul.u32 %s20, 8
      %s225 = smul.u32 %s224, 24
      %s226 = scalar_lea.vmem %s211, %s225
      %v227 = vld [vmem:[%s226] sm:$0xff]
      %v228 = vld [vmem:[%s226 + $0x8] sm:$0xff]
      %v229 = vld [vmem:[%s226 + $0x10] sm:$0x3]
      %v230 = vld [vmem:[%s226 + $0x18] sm:$0xff]
      %v231 = vld [vmem:[%s226 + $0x20] sm:$0xff]
      %v232 = vld [vmem:[%s226 + $0x28] sm:$0x3]
      %v233 = vld [vmem:[%s226 + $0x30] sm:$0xff]
      %v234 = vld [vmem:[%s226 + $0x38] sm:$0xff]
      %v235 = vld [vmem:[%s226 + $0x40] sm:$0x3]
      %v236 = vld [vmem:[%s226 + $0x48] sm:$0xff]
      %v237 = vld [vmem:[%s226 + $0x50] sm:$0xff]
      %v238 = vld [vmem:[%s226 + $0x58] sm:$0x3]
      %v239 = vld [vmem:[%s226 + $0x60] sm:$0xff]
      %v240 = vld [vmem:[%s226 + $0x68] sm:$0xff]
      %v241 = vld [vmem:[%s226 + $0x70] sm:$0x3]
      %v242 = vld [vmem:[%s226 + $0x78] sm:$0xff]
      %v243 = vld [vmem:[%s226 + $0x80] sm:$0xff]
      %v244 = vld [vmem:[%s226 + $0x88] sm:$0x3]
      %v245 = vld [vmem:[%s226 + $0x90] sm:$0xff]
      %v246 = vld [vmem:[%s226 + $0x98] sm:$0xff]
      %v247 = vld [vmem:[%s226 + $0xa0] sm:$0x3]
      %v248 = vld [vmem:[%s226 + $0xa8] sm:$0xff]
      %v249 = vld [vmem:[%s226 + $0xb0] sm:$0xff]
      %v250 = vld [vmem:[%s226 + $0xb8] sm:$0x3]
      %v251 = vld [vmem:[%s226 + $0xc0] sm:$0xff]
      %v252 = vld [vmem:[%s226 + $0xc8] sm:$0xff]
      %v253 = vld [vmem:[%s226 + $0xd0] sm:$0x3]
      %v254 = vld [vmem:[%s226 + $0xd8] sm:$0xff]
      %v255 = vld [vmem:[%s226 + $0xe0] sm:$0xff]
      %v256 = vld [vmem:[%s226 + $0xe8] sm:$0x3]
      %v257 = vld [vmem:[%s226 + $0xf0] sm:$0xff]
      %v258 = vld [vmem:[%s226 + $0xf8] sm:$0xff]
      %v259 = vld [vmem:[%s226 + $0x100] sm:$0x3]
      %v260 = vld [vmem:[%s226 + $0x108] sm:$0xff]
      %v261 = vld [vmem:[%s226 + $0x110] sm:$0xff]
      %v262 = vld [vmem:[%s226 + $0x118] sm:$0x3]
      %v263 = vpack.c.bf16 %v227, %v227
      %v264 = vpack.c.bf16 %v228, %v228
      %v265 = vpack.c.bf16 %v229, %v229
      %v266 = vpack.c.bf16 %v230, %v230
      %v267 = vpack.c.bf16 %v231, %v231
      %v268 = vpack.c.bf16 %v232, %v232
      %v269 = vpack.c.bf16 %v233, %v233
      %v270 = vpack.c.bf16 %v234, %v234
      %v271 = vpack.c.bf16 %v235, %v235
      %v272 = vpack.c.bf16 %v236, %v236
      %v273 = vpack.c.bf16 %v237, %v237
      %v274 = vpack.c.bf16 %v238, %v238
      %v275 = vpack.c.bf16 %v239, %v239
      %v276 = vpack.c.bf16 %v240, %v240
      %v277 = vpack.c.bf16 %v241, %v241
      %v278 = vpack.c.bf16 %v242, %v242
      %v279 = vpack.c.bf16 %v243, %v243
      %v280 = vpack.c.bf16 %v244, %v244
      %v281 = vpack.c.bf16 %v245, %v245
      %v282 = vpack.c.bf16 %v246, %v246
      %v283 = vpack.c.bf16 %v247, %v247
      %v284 = vpack.c.bf16 %v248, %v248
      %v285 = vpack.c.bf16 %v249, %v249
      %v286 = vpack.c.bf16 %v250, %v250
      %v287 = vpack.c.bf16 %v251, %v251
      %v288 = vpack.c.bf16 %v252, %v252
      %v289 = vpack.c.bf16 %v253, %v253
      %v290 = vpack.c.bf16 %v254, %v254
      %v291 = vpack.c.bf16 %v255, %v255
      %v292 = vpack.c.bf16 %v256, %v256
      %v293 = vpack.c.bf16 %v257, %v257
      %v294 = vpack.c.bf16 %v258, %v258
      %v295 = vpack.c.bf16 %v259, %v259
      %v296 = vpack.c.bf16 %v260, %v260
      %v297 = vpack.c.bf16 %v261, %v261
      %v298 = vpack.c.bf16 %v262, %v262
      %vm299 = vsmask.f32 3328
      %vm300 = vsmask.f32 7440
      %vm301 = vmor %vm299, %vm300
      %v303 = vshrl.u32 %v263, 16
      %v305 = vrot.slane %v303, 4
      %v306 = vshll.u32 %v263, 16
      %v308 = vrot.slane %v306, 5
      %v309 = vor.u32 %v305, %v308
      %v310 = vrot.slane %v309, 4
      %v312 = vshll.u32 %v264, 16
      %v314 = vrot.slane %v312, 5
      %v315 = vsel %vm301, %v310, %v314
      %v316 = vshrl.u32 %v264, 16
      %v318 = vrot.slane %v316, 4
      %v319 = vor.u32 %v318, %v314
      %v320 = vrot.slane %v319, 4
      %v322 = vshll.u32 %v265, 16
      %v324 = vrot.slane %v322, 5
      %v325 = vsel %vm301, %v320, %v324
      %v327 = vshrl.u32 %v266, 16
      %v329 = vrot.slane %v327, 4
      %v330 = vshll.u32 %v266, 16
      %v332 = vrot.slane %v330, 5
      %v333 = vor.u32 %v329, %v332
      %v334 = vrot.slane %v333, 4
      %v336 = vshll.u32 %v267, 16
      %v338 = vrot.slane %v336, 5
      %v339 = vsel %vm301, %v334, %v338
      %v340 = vshrl.u32 %v267, 16
      %v342 = vrot.slane %v340, 4
      %v343 = vor.u32 %v342, %v338
      %v344 = vrot.slane %v343, 4
      %v346 = vshll.u32 %v268, 16
      %v348 = vrot.slane %v346, 5
      %v349 = vsel %vm301, %v344, %v348
      %v351 = vshrl.u32 %v269, 16
      %v353 = vrot.slane %v351, 4
      %v354 = vshll.u32 %v269, 16
      %v356 = vrot.slane %v354, 5
      %v357 = vor.u32 %v353, %v356
      %v358 = vrot.slane %v357, 4
      %v360 = vshll.u32 %v270, 16
      %v362 = vrot.slane %v360, 5
      %v363 = vsel %vm301, %v358, %v362
      %v364 = vshrl.u32 %v270, 16
      %v366 = vrot.slane %v364, 4
      %v367 = vor.u32 %v366, %v362
      %v368 = vrot.slane %v367, 4
      %v370 = vshll.u32 %v271, 16
      %v372 = vrot.slane %v370, 5
      %v373 = vsel %vm301, %v368, %v372
      %v375 = vshrl.u32 %v272, 16
      %v377 = vrot.slane %v375, 4
      %v378 = vshll.u32 %v272, 16
      %v380 = vrot.slane %v378, 5
      %v381 = vor.u32 %v377, %v380
      %v382 = vrot.slane %v381, 4
      %v384 = vshll.u32 %v273, 16
      %v386 = vrot.slane %v384, 5
      %v387 = vsel %vm301, %v382, %v386
      %v388 = vshrl.u32 %v273, 16
      %v390 = vrot.slane %v388, 4
      %v391 = vor.u32 %v390, %v386
      %v392 = vrot.slane %v391, 4
      %v394 = vshll.u32 %v274, 16
      %v396 = vrot.slane %v394, 5
      %v397 = vsel %vm301, %v392, %v396
      %v399 = vshrl.u32 %v275, 16
      %v401 = vrot.slane %v399, 4
      %v402 = vshll.u32 %v275, 16
      %v404 = vrot.slane %v402, 5
      %v405 = vor.u32 %v401, %v404
      %v406 = vrot.slane %v405, 4
      %v408 = vshll.u32 %v276, 16
      %v410 = vrot.slane %v408, 5
      %v411 = vsel %vm301, %v406, %v410
      %v412 = vshrl.u32 %v276, 16
      %v414 = vrot.slane %v412, 4
      %v415 = vor.u32 %v414, %v410
      %v416 = vrot.slane %v415, 4
      %v418 = vshll.u32 %v277, 16
      %v420 = vrot.slane %v418, 5
      %v421 = vsel %vm301, %v416, %v420
      %v423 = vshrl.u32 %v278, 16
      %v425 = vrot.slane %v423, 4
      %v426 = vshll.u32 %v278, 16
      %v428 = vrot.slane %v426, 5
      %v429 = vor.u32 %v425, %v428
      %v430 = vrot.slane %v429, 4
      %v432 = vshll.u32 %v279, 16
      %v434 = vrot.slane %v432, 5
      %v435 = vsel %vm301, %v430, %v434
      %v436 = vshrl.u32 %v279, 16
      %v438 = vrot.slane %v436, 4
      %v439 = vor.u32 %v438, %v434
      %v440 = vrot.slane %v439, 4
      %v442 = vshll.u32 %v280, 16
      %v444 = vrot.slane %v442, 5
      %v445 = vsel %vm301, %v440, %v444
      %v447 = vshrl.u32 %v281, 16
      %v449 = vrot.slane %v447, 4
      %v450 = vshll.u32 %v281, 16
      %v452 = vrot.slane %v450, 5
      %v453 = vor.u32 %v449, %v452
      %v454 = vrot.slane %v453, 4
      %v456 = vshll.u32 %v282, 16
      %v458 = vrot.slane %v456, 5
      %v459 = vsel %vm301, %v454, %v458
      %v460 = vshrl.u32 %v282, 16
      %v462 = vrot.slane %v460, 4
      %v463 = vor.u32 %v462, %v458
      %v464 = vrot.slane %v463, 4
      %v466 = vshll.u32 %v283, 16
      %v468 = vrot.slane %v466, 5
      %v469 = vsel %vm301, %v464, %v468
      %v471 = vshrl.u32 %v284, 16
      %v473 = vrot.slane %v471, 4
      %v474 = vshll.u32 %v284, 16
      %v476 = vrot.slane %v474, 5
      %v477 = vor.u32 %v473, %v476
      %v478 = vrot.slane %v477, 4
      %v480 = vshll.u32 %v285, 16
      %v482 = vrot.slane %v480, 5
      %v483 = vsel %vm301, %v478, %v482
      %v484 = vshrl.u32 %v285, 16
      %v486 = vrot.slane %v484, 4
      %v487 = vor.u32 %v486, %v482
      %v488 = vrot.slane %v487, 4
      %v490 = vshll.u32 %v286, 16
      %v492 = vrot.slane %v490, 5
      %v493 = vsel %vm301, %v488, %v492
      %v495 = vshrl.u32 %v287, 16
      %v497 = vrot.slane %v495, 4
      %v498 = vshll.u32 %v287, 16
      %v500 = vrot.slane %v498, 5
      %v501 = vor.u32 %v497, %v500
      %v502 = vrot.slane %v501, 4
      %v504 = vshll.u32 %v288, 16
      %v506 = vrot.slane %v504, 5
      %v507 = vsel %vm301, %v502, %v506
      %v508 = vshrl.u32 %v288, 16
      %v510 = vrot.slane %v508, 4
      %v511 = vor.u32 %v510, %v506
      %v512 = vrot.slane %v511, 4
      %v514 = vshll.u32 %v289, 16
      %v516 = vrot.slane %v514, 5
      %v517 = vsel %vm301, %v512, %v516
      %v519 = vshrl.u32 %v290, 16
      %v521 = vrot.slane %v519, 4
      %v522 = vshll.u32 %v290, 16
      %v524 = vrot.slane %v522, 5
      %v525 = vor.u32 %v521, %v524
      %v526 = vrot.slane %v525, 4
      %v528 = vshll.u32 %v291, 16
      %v530 = vrot.slane %v528, 5
      %v531 = vsel %vm301, %v526, %v530
      %v532 = vshrl.u32 %v291, 16
      %v534 = vrot.slane %v532, 4
      %v535 = vor.u32 %v534, %v530
      %v536 = vrot.slane %v535, 4
      %v538 = vshll.u32 %v292, 16
      %v540 = vrot.slane %v538, 5
      %v541 = vsel %vm301, %v536, %v540
      %vm572 = vcmask 1042432
      %vm573 = vcmask 1046532
      %vm574 = vmor %vm572, %vm573
      %v575 = vrot.slane %v263, 5
      %v576 = vrot.slane %v575, 4
      %v577 = vrot.slane %v264, 5
      %v578 = vsel %vm574, %v576, %v577
      %v579 = vrot.slane %v577, 4
      %v580 = vrot.slane %v265, 5
      %v581 = vsel %vm574, %v579, %v580
      %v582 = vrot.slane %v266, 5
      %v583 = vrot.slane %v582, 4
      %v584 = vrot.slane %v267, 5
      %v585 = vsel %vm574, %v583, %v584
      %v586 = vrot.slane %v584, 4
      %v587 = vrot.slane %v268, 5
      %v588 = vsel %vm574, %v586, %v587
      %v589 = vrot.slane %v269, 5
      %v590 = vrot.slane %v589, 4
      %v591 = vrot.slane %v270, 5
      %v592 = vsel %vm574, %v590, %v591
      %v593 = vrot.slane %v591, 4
      %v594 = vrot.slane %v271, 5
      %v595 = vsel %vm574, %v593, %v594
      %v596 = vrot.slane %v272, 5
      %v597 = vrot.slane %v596, 4
      %v598 = vrot.slane %v273, 5
      %v599 = vsel %vm574, %v597, %v598
      %v600 = vrot.slane %v598, 4
      %v601 = vrot.slane %v274, 5
      %v602 = vsel %vm574, %v600, %v601
      %v603 = vrot.slane %v275, 5
      %v604 = vrot.slane %v603, 4
      %v605 = vrot.slane %v276, 5
      %v606 = vsel %vm574, %v604, %v605
      %v607 = vrot.slane %v605, 4
      %v608 = vrot.slane %v277, 5
      %v609 = vsel %vm574, %v607, %v608
      %v610 = vrot.slane %v278, 5
      %v611 = vrot.slane %v610, 4
      %v612 = vrot.slane %v279, 5
      %v613 = vsel %vm574, %v611, %v612
      %v614 = vrot.slane %v612, 4
      %v615 = vrot.slane %v280, 5
      %v616 = vsel %vm574, %v614, %v615
      %v617 = vrot.slane %v281, 5
      %v618 = vrot.slane %v617, 4
      %v619 = vrot.slane %v282, 5
      %v620 = vsel %vm574, %v618, %v619
      %v621 = vrot.slane %v619, 4
      %v622 = vrot.slane %v283, 5
      %v623 = vsel %vm574, %v621, %v622
      %v624 = vrot.slane %v284, 5
      %v625 = vrot.slane %v624, 4
      %v626 = vrot.slane %v285, 5
      %v627 = vsel %vm574, %v625, %v626
      %v628 = vrot.slane %v626, 4
      %v629 = vrot.slane %v286, 5
      %v630 = vsel %vm574, %v628, %v629
      %v631 = vrot.slane %v287, 5
      %v632 = vrot.slane %v631, 4
      %v633 = vrot.slane %v288, 5
      %v634 = vsel %vm574, %v632, %v633
      %v635 = vrot.slane %v633, 4
      %v636 = vrot.slane %v289, 5
      %v637 = vsel %vm574, %v635, %v636
      %v638 = vrot.slane %v290, 5
      %v639 = vrot.slane %v638, 4
      %v640 = vrot.slane %v291, 5
      %v641 = vsel %vm574, %v639, %v640
      %v642 = vrot.slane %v640, 4
      %v643 = vrot.slane %v292, 5
      %v644 = vsel %vm574, %v642, %v643
      %v646 = vshrl.u32 %v293, 16
      %v648 = vrot.slane %v646, 4
      %v649 = vshll.u32 %v293, 16
      %v651 = vrot.slane %v649, 5
      %v652 = vor.u32 %v648, %v651
      %v653 = vrot.slane %v652, 4
      %v655 = vshll.u32 %v294, 16
      %v657 = vrot.slane %v655, 5
      %v658 = vsel %vm301, %v653, %v657
      %v659 = vshrl.u32 %v294, 16
      %v661 = vrot.slane %v659, 4
      %v662 = vor.u32 %v661, %v657
      %v663 = vrot.slane %v662, 4
      %v665 = vshll.u32 %v295, 16
      %v667 = vrot.slane %v665, 5
      %v668 = vsel %vm301, %v663, %v667
      %v672 = vrot.slane %v293, 5
      %v673 = vrot.slane %v672, 4
      %v674 = vrot.slane %v294, 5
      %v675 = vsel %vm574, %v673, %v674
      %v676 = vrot.slane %v674, 4
      %v677 = vrot.slane %v295, 5
      %v678 = vsel %vm574, %v676, %v677
      %v680 = vshrl.u32 %v296, 16
      %v682 = vrot.slane %v680, 4
      %v683 = vshll.u32 %v296, 16
      %v685 = vrot.slane %v683, 5
      %v686 = vor.u32 %v682, %v685
      %v687 = vrot.slane %v686, 4
      %v689 = vshll.u32 %v297, 16
      %v691 = vrot.slane %v689, 5
      %v692 = vsel %vm301, %v687, %v691
      %v693 = vshrl.u32 %v297, 16
      %v695 = vrot.slane %v693, 4
      %v696 = vor.u32 %v695, %v691
      %v697 = vrot.slane %v696, 4
      %v699 = vshll.u32 %v298, 16
      %v701 = vrot.slane %v699, 5
      %v702 = vsel %vm301, %v697, %v701
      %v706 = vrot.slane %v296, 5
      %v707 = vrot.slane %v706, 4
      %v708 = vrot.slane %v297, 5
      %v709 = vsel %vm574, %v707, %v708
      %v710 = vrot.slane %v708, 4
      %v711 = vrot.slane %v298, 5
      %v712 = vsel %vm574, %v710, %v711
      %v713 = vunpack.c.l.b16 %v263
      %v714 = vunpack.c.l.b16 %v264
      %v715 = vunpack.c.l.b16 %v266
      %v716 = vunpack.c.l.b16 %v267
      %v717 = vunpack.c.l.b16 %v269
      %v718 = vunpack.c.l.b16 %v270
      %v719 = vunpack.c.l.b16 %v272
      %v720 = vunpack.c.l.b16 %v273
      %v721 = vunpack.c.l.b16 %v275
      %v722 = vunpack.c.l.b16 %v276
      %v723 = vunpack.c.l.b16 %v278
      %v724 = vunpack.c.l.b16 %v279
      %v725 = vunpack.c.l.b16 %v281
      %v726 = vunpack.c.l.b16 %v282
      %v727 = vunpack.c.l.b16 %v284
      %v728 = vunpack.c.l.b16 %v285
      %v729 = vunpack.c.l.b16 %v287
      %v730 = vunpack.c.l.b16 %v288
      %v731 = vunpack.c.l.b16 %v290
      %v732 = vunpack.c.l.b16 %v291
      %v733 = vpack.c.b16 %v714, %v713
      %v734 = vpack.c.b16 %v716, %v715
      %v735 = vpack.c.b16 %v718, %v717
      %v736 = vpack.c.b16 %v720, %v719
      %v737 = vpack.c.b16 %v722, %v721
      %v738 = vpack.c.b16 %v724, %v723
      %v739 = vpack.c.b16 %v726, %v725
      %v740 = vpack.c.b16 %v728, %v727
      %v741 = vpack.c.b16 %v730, %v729
      %v742 = vpack.c.b16 %v732, %v731
      %v753 = vunpack.c.l.b16 %v315
      %v754 = vunpack.c.l.b16 %v325
      %v755 = vunpack.c.l.b16 %v339
      %v756 = vunpack.c.l.b16 %v349
      %v757 = vunpack.c.l.b16 %v363
      %v758 = vunpack.c.l.b16 %v373
      %v759 = vunpack.c.l.b16 %v387
      %v760 = vunpack.c.l.b16 %v397
      %v761 = vunpack.c.l.b16 %v411
      %v762 = vunpack.c.l.b16 %v421
      %v763 = vunpack.c.l.b16 %v435
      %v764 = vunpack.c.l.b16 %v445
      %v765 = vunpack.c.l.b16 %v459
      %v766 = vunpack.c.l.b16 %v469
      %v767 = vunpack.c.l.b16 %v483
      %v768 = vunpack.c.l.b16 %v493
      %v769 = vunpack.c.l.b16 %v507
      %v770 = vunpack.c.l.b16 %v517
      %v771 = vunpack.c.l.b16 %v531
      %v772 = vunpack.c.l.b16 %v541
      %v773 = vpack.c.b16 %v754, %v753
      %v774 = vpack.c.b16 %v756, %v755
      %v775 = vpack.c.b16 %v758, %v757
      %v776 = vpack.c.b16 %v760, %v759
      %v777 = vpack.c.b16 %v762, %v761
      %v778 = vpack.c.b16 %v764, %v763
      %v779 = vpack.c.b16 %v766, %v765
      %v780 = vpack.c.b16 %v768, %v767
      %v781 = vpack.c.b16 %v770, %v769
      %v782 = vpack.c.b16 %v772, %v771
      %v793 = vunpack.c.l.b16 %v578
      %v794 = vunpack.c.l.b16 %v581
      %v795 = vunpack.c.l.b16 %v585
      %v796 = vunpack.c.l.b16 %v588
      %v797 = vunpack.c.l.b16 %v592
      %v798 = vunpack.c.l.b16 %v595
      %v799 = vunpack.c.l.b16 %v599
      %v800 = vunpack.c.l.b16 %v602
      %v801 = vunpack.c.l.b16 %v606
      %v802 = vunpack.c.l.b16 %v609
      %v803 = vunpack.c.l.b16 %v613
      %v804 = vunpack.c.l.b16 %v616
      %v805 = vunpack.c.l.b16 %v620
      %v806 = vunpack.c.l.b16 %v623
      %v807 = vunpack.c.l.b16 %v627
      %v808 = vunpack.c.l.b16 %v630
      %v809 = vunpack.c.l.b16 %v634
      %v810 = vunpack.c.l.b16 %v637
      %v811 = vunpack.c.l.b16 %v641
      %v812 = vunpack.c.l.b16 %v644
      %v813 = vpack.c.b16 %v794, %v793
      %v814 = vpack.c.b16 %v796, %v795
      %v815 = vpack.c.b16 %v798, %v797
      %v816 = vpack.c.b16 %v800, %v799
      %v817 = vpack.c.b16 %v802, %v801
      %v818 = vpack.c.b16 %v804, %v803
      %v819 = vpack.c.b16 %v806, %v805
      %v820 = vpack.c.b16 %v808, %v807
      %v821 = vpack.c.b16 %v810, %v809
      %v822 = vpack.c.b16 %v812, %v811
      %v833 = vunpack.c.l.b16 %v293
      %v834 = vunpack.c.l.b16 %v294
      %v835 = vpack.c.b16 %v834, %v833
      %v837 = vunpack.c.l.b16 %v658
      %v838 = vunpack.c.l.b16 %v668
      %v839 = vpack.c.b16 %v838, %v837
      %v841 = vunpack.c.l.b16 %v675
      %v842 = vunpack.c.l.b16 %v678
      %v843 = vpack.c.b16 %v842, %v841
      %v845 = vunpack.c.l.b16 %v296
      %v846 = vunpack.c.l.b16 %v297
      %v847 = vpack.c.b16 %v846, %v845
      %v849 = vunpack.c.l.b16 %v692
      %v850 = vunpack.c.l.b16 %v702
      %v851 = vpack.c.b16 %v850, %v849
      %v853 = vunpack.c.l.b16 %v709
      %v854 = vunpack.c.l.b16 %v712
      %v855 = vpack.c.b16 %v854, %v853
      %v857 = vld [vmem:[%s1] sm:$0xf]
      %v858 = vld [vmem:[%s1 + $0x4] sm:$0xf]
      %v859 = vld [vmem:[%s1 + $0x8] sm:$0xf]
      %v860 = vld [vmem:[%s1 + $0xc] sm:$0xf]
      %v861 = vld [vmem:[%s1 + $0x10] sm:$0xf]
      %v862 = vld [vmem:[%s1 + $0x14] sm:$0xf]
      %v863 = vld [vmem:[%s1 + $0x18] sm:$0xf]
      %v864 = vld [vmem:[%s1 + $0x1c] sm:$0xf]
      %v865 = vld [vmem:[%s1 + $0x20] sm:$0xf]
      %v866 = vld [vmem:[%s1 + $0x24] sm:$0xf]
      %v867 = vld [vmem:[%s1 + $0x28] sm:$0xf]
      %v868 = vld [vmem:[%s1 + $0x2c] sm:$0xf]
      %v869 = vld [vmem:[%s1 + $0x30] sm:$0xf]
      %v870 = vld [vmem:[%s1 + $0x34] sm:$0xf]
      %v871 = vld [vmem:[%s1 + $0x38] sm:$0xf]
      %v872 = vld [vmem:[%s1 + $0x3c] sm:$0xf]
      %v873 = vld [vmem:[%s1 + $0x40] sm:$0xf]
      %v874 = vld [vmem:[%s1 + $0x44] sm:$0xf]
      %v875 = vld [vmem:[%s1 + $0x48] sm:$0xf]
      %v876 = vld [vmem:[%s1 + $0x4c] sm:$0xf]
      %v877 = vld [vmem:[%s1 + $0x50] sm:$0xf]
      %v878 = vld [vmem:[%s1 + $0x54] sm:$0xf]
      %v879 = vld [vmem:[%s1 + $0x58] sm:$0xf]
      %v880 = vld [vmem:[%s1 + $0x5c] sm:$0xf]
      %v881 = vld [vmem:[%s1 + $0x60] sm:$0xf]
      %v882 = vld [vmem:[%s1 + $0x64] sm:$0xf]
      %v883 = vld [vmem:[%s1 + $0x68] sm:$0xf]
      %v884 = vld [vmem:[%s1 + $0x6c] sm:$0xf]
      %v885 = vld [vmem:[%s1 + $0x70] sm:$0xf]
      %v886 = vld [vmem:[%s1 + $0x74] sm:$0xf]
      %v887 = vld [vmem:[%s1 + $0x78] sm:$0xf]
      %v888 = vld [vmem:[%s1 + $0x7c] sm:$0xf]
      %v889 = vld [vmem:[%s1 + $0x80] sm:$0xf]
      %v890 = vld [vmem:[%s1 + $0x84] sm:$0xf]
      %v891 = vld [vmem:[%s1 + $0x88] sm:$0xf]
      %v892 = vld [vmem:[%s1 + $0x8c] sm:$0xf]
      %v893 = vld [vmem:[%s1 + $0x90] sm:$0xf]
      %v894 = vld [vmem:[%s1 + $0x94] sm:$0xf]
      %v895 = vld [vmem:[%s1 + $0x98] sm:$0xf]
      %v896 = vld [vmem:[%s1 + $0x9c] sm:$0xf]
      %v897 = vld [vmem:[%s1 + $0xa0] sm:$0xf]
      %v898 = vld [vmem:[%s1 + $0xa4] sm:$0xf]
      %v899 = vld [vmem:[%s1 + $0xa8] sm:$0xf]
      %v900 = vld [vmem:[%s1 + $0xac] sm:$0xf]
      %v901 = vld [vmem:[%s1 + $0xb0] sm:$0xf]
      %v902 = vld [vmem:[%s1 + $0xb4] sm:$0xf]
      %v903 = vld [vmem:[%s1 + $0xb8] sm:$0xf]
      %v904 = vld [vmem:[%s1 + $0xbc] sm:$0xf]
      %v905 = vld [vmem:[%s1 + $0xc0] sm:$0xf]
      %v906 = vld [vmem:[%s1 + $0xc4] sm:$0xf]
      %v907 = vld [vmem:[%s1 + $0xc8] sm:$0xf]
      %v908 = vld [vmem:[%s1 + $0xcc] sm:$0xf]
      %v909 = vld [vmem:[%s1 + $0xd0] sm:$0xf]
      %v910 = vld [vmem:[%s1 + $0xd4] sm:$0xf]
      %v911 = vld [vmem:[%s1 + $0xd8] sm:$0xf]
      %v912 = vld [vmem:[%s1 + $0xdc] sm:$0xf]
      %v913 = vld [vmem:[%s1 + $0xe0] sm:$0xf]
      %v914 = vld [vmem:[%s1 + $0xe4] sm:$0xf]
      %v915 = vld [vmem:[%s1 + $0xe8] sm:$0xf]
      %v916 = vld [vmem:[%s1 + $0xec] sm:$0xf]
      %v917 = vld [vmem:[%s1 + $0xf0] sm:$0xf]
      %v918 = vld [vmem:[%s1 + $0xf4] sm:$0xf]
      %v919 = vld [vmem:[%s1 + $0xf8] sm:$0xf]
      %v920 = vld [vmem:[%s1 + $0xfc] sm:$0xf]
      %v921 = vld [vmem:[%s1 + $0x100] sm:$0xf]
      %v922 = vld [vmem:[%s1 + $0x104] sm:$0xf]
      %v923 = vld [vmem:[%s1 + $0x108] sm:$0xf]
      %v924 = vld [vmem:[%s1 + $0x10c] sm:$0xf]
      %v925 = vld [vmem:[%s1 + $0x110] sm:$0xf]
      %v926 = vld [vmem:[%s1 + $0x114] sm:$0xf]
      %v927 = vld [vmem:[%s1 + $0x118] sm:$0xf]
      %v928 = vld [vmem:[%s1 + $0x11c] sm:$0xf]
      %v929 = vld [vmem:[%s1 + $0x120] sm:$0xf]
      %v930 = vld [vmem:[%s1 + $0x124] sm:$0xf]
      %v931 = vld [vmem:[%s1 + $0x128] sm:$0xf]
      %v932 = vld [vmem:[%s1 + $0x12c] sm:$0xf]
      %v933 = vld [vmem:[%s1 + $0x130] sm:$0xf]
      %v934 = vld [vmem:[%s1 + $0x134] sm:$0xf]
      %v935 = vld [vmem:[%s1 + $0x138] sm:$0xf]
      %v936 = vld [vmem:[%s1 + $0x13c] sm:$0xf]
      %v937 = vld [vmem:[%s1 + $0x140] sm:$0xf]
      %v938 = vld [vmem:[%s1 + $0x144] sm:$0xf]
      %v939 = vld [vmem:[%s1 + $0x148] sm:$0xf]
      %v940 = vld [vmem:[%s1 + $0x14c] sm:$0xf]
      %v941 = vld [vmem:[%s1 + $0x150] sm:$0xf]
      %v942 = vld [vmem:[%s1 + $0x154] sm:$0xf]
      %v943 = vld [vmem:[%s1 + $0x158] sm:$0xf]
      %v944 = vld [vmem:[%s1 + $0x15c] sm:$0xf]
      %v945 = vld [vmem:[%s1 + $0x160] sm:$0xf]
      %v946 = vld [vmem:[%s1 + $0x164] sm:$0xf]
      %v947 = vld [vmem:[%s1 + $0x168] sm:$0xf]
      %v948 = vld [vmem:[%s1 + $0x16c] sm:$0xf]
      %v949 = vld [vmem:[%s1 + $0x170] sm:$0xf]
      %v950 = vld [vmem:[%s1 + $0x174] sm:$0xf]
      %v951 = vld [vmem:[%s1 + $0x178] sm:$0xf]
      %v952 = vld [vmem:[%s1 + $0x17c] sm:$0xf]
      %v953 = vld [vmem:[%s1 + $0x180] sm:$0xf]
      %v954 = vld [vmem:[%s1 + $0x184] sm:$0xf]
      %v955 = vld [vmem:[%s1 + $0x188] sm:$0xf]
      %v956 = vld [vmem:[%s1 + $0x18c] sm:$0xf]
      %v957 = vld [vmem:[%s1 + $0x190] sm:$0xf]
      %v958 = vld [vmem:[%s1 + $0x194] sm:$0xf]
      %v959 = vld [vmem:[%s1 + $0x198] sm:$0xf]
      %v960 = vld [vmem:[%s1 + $0x19c] sm:$0xf]
      %v961 = vld [vmem:[%s1 + $0x1a0] sm:$0xf]
      %v962 = vld [vmem:[%s1 + $0x1a4] sm:$0xf]
      %v963 = vld [vmem:[%s1 + $0x1a8] sm:$0xf]
      %v964 = vld [vmem:[%s1 + $0x1ac] sm:$0xf]
      %v965 = vld [vmem:[%s1 + $0x1b0] sm:$0xf]
      %v966 = vld [vmem:[%s1 + $0x1b4] sm:$0xf]
      %v967 = vld [vmem:[%s1 + $0x1b8] sm:$0xf]
      %v968 = vld [vmem:[%s1 + $0x1bc] sm:$0xf]
      %v969 = vld [vmem:[%s1 + $0x1c0] sm:$0xf]
      %v970 = vld [vmem:[%s1 + $0x1c4] sm:$0xf]
      %v971 = vld [vmem:[%s1 + $0x1c8] sm:$0xf]
      %v972 = vld [vmem:[%s1 + $0x1cc] sm:$0xf]
      %v973 = vld [vmem:[%s1 + $0x1d0] sm:$0xf]
      %v974 = vld [vmem:[%s1 + $0x1d4] sm:$0xf]
      %v975 = vld [vmem:[%s1 + $0x1d8] sm:$0xf]
      %v976 = vld [vmem:[%s1 + $0x1dc] sm:$0xf]
      %v977 = vld [vmem:[%s1 + $0x1e0] sm:$0xf]
      %v978 = vld [vmem:[%s1 + $0x1e4] sm:$0xf]
      %v979 = vld [vmem:[%s1 + $0x1e8] sm:$0xf]
      %v980 = vld [vmem:[%s1 + $0x1ec] sm:$0xf]
      %v981 = vld [vmem:[%s1 + $0x1f0] sm:$0xf]
      %v982 = vld [vmem:[%s1 + $0x1f4] sm:$0xf]
      %v983 = vld [vmem:[%s1 + $0x1f8] sm:$0xf]
      %v984 = vld [vmem:[%s1 + $0x1fc] sm:$0xf]
      %v985 = vld [vmem:[%s1 + $0x200] sm:$0xf]
      %v986 = vld [vmem:[%s1 + $0x204] sm:$0xf]
      %v987 = vld [vmem:[%s1 + $0x208] sm:$0xf]
      %v988 = vld [vmem:[%s1 + $0x20c] sm:$0xf]
      %v989 = vld [vmem:[%s1 + $0x210] sm:$0xf]
      %v990 = vld [vmem:[%s1 + $0x214] sm:$0xf]
      %v991 = vld [vmem:[%s1 + $0x218] sm:$0xf]
      %v992 = vld [vmem:[%s1 + $0x21c] sm:$0xf]
      %v993 = vld [vmem:[%s1 + $0x220] sm:$0xf]
      %v994 = vld [vmem:[%s1 + $0x224] sm:$0xf]
      %v995 = vld [vmem:[%s1 + $0x228] sm:$0xf]
      %v996 = vld [vmem:[%s1 + $0x22c] sm:$0xf]
      %v997 = vld [vmem:[%s1 + $0x230] sm:$0xf]
      %v998 = vld [vmem:[%s1 + $0x234] sm:$0xf]
      %v999 = vld [vmem:[%s1 + $0x238] sm:$0xf]
      %v1000 = vld [vmem:[%s1 + $0x23c] sm:$0xf]
      %v1145 = vunpack.c.l.b16 %v857
      %v1146 = vunpack.c.l.b16 %v858
      %v1147 = vunpack.c.l.b16 %v859
      %v1148 = vunpack.c.l.b16 %v860
      %v1149 = vunpack.c.l.b16 %v861
      %v1150 = vunpack.c.l.b16 %v862
      %v1151 = vunpack.c.l.b16 %v863
      %v1152 = vunpack.c.l.b16 %v864
      %v1153 = vunpack.c.l.b16 %v865
      %v1154 = vunpack.c.l.b16 %v866
      %v1155 = vunpack.c.l.b16 %v867
      %v1156 = vunpack.c.l.b16 %v868
      %v1157 = vunpack.c.l.b16 %v869
      %v1158 = vunpack.c.l.b16 %v870
      %v1159 = vunpack.c.l.b16 %v871
      %v1160 = vunpack.c.l.b16 %v872
      %v1161 = vunpack.c.l.b16 %v873
      %v1162 = vunpack.c.l.b16 %v874
      %v1163 = vunpack.c.l.b16 %v875
      %v1164 = vunpack.c.l.b16 %v876
      %v1165 = vunpack.c.l.b16 %v877
      %v1166 = vunpack.c.l.b16 %v878
      %v1167 = vunpack.c.l.b16 %v879
      %v1168 = vunpack.c.l.b16 %v880
      %v1169 = vunpack.c.l.b16 %v881
      %v1170 = vunpack.c.l.b16 %v882
      %v1171 = vunpack.c.l.b16 %v883
      %v1172 = vunpack.c.l.b16 %v884
      %v1173 = vunpack.c.l.b16 %v885
      %v1174 = vunpack.c.l.b16 %v886
      %v1175 = vunpack.c.l.b16 %v887
      %v1176 = vunpack.c.l.b16 %v888
      %v1177 = vunpack.c.l.b16 %v889
      %v1178 = vunpack.c.l.b16 %v890
      %v1179 = vunpack.c.l.b16 %v891
      %v1180 = vunpack.c.l.b16 %v892
      %v1181 = vunpack.c.l.b16 %v893
      %v1182 = vunpack.c.l.b16 %v894
      %v1183 = vunpack.c.l.b16 %v895
      %v1184 = vunpack.c.l.b16 %v896
      %v1185 = vunpack.c.l.b16 %v897
      %v1186 = vunpack.c.l.b16 %v898
      %v1187 = vunpack.c.l.b16 %v899
      %v1188 = vunpack.c.l.b16 %v900
      %v1189 = vunpack.c.l.b16 %v901
      %v1190 = vunpack.c.l.b16 %v902
      %v1191 = vunpack.c.l.b16 %v903
      %v1192 = vunpack.c.l.b16 %v904
      %v1193 = vunpack.c.l.b16 %v905
      %v1194 = vunpack.c.l.b16 %v906
      %v1195 = vunpack.c.l.b16 %v907
      %v1196 = vunpack.c.l.b16 %v908
      %v1197 = vunpack.c.l.b16 %v909
      %v1198 = vunpack.c.l.b16 %v910
      %v1199 = vunpack.c.l.b16 %v911
      %v1200 = vunpack.c.l.b16 %v912
      %v1201 = vunpack.c.l.b16 %v913
      %v1202 = vunpack.c.l.b16 %v914
      %v1203 = vunpack.c.l.b16 %v915
      %v1204 = vunpack.c.l.b16 %v916
      %v1205 = vunpack.c.l.b16 %v917
      %v1206 = vunpack.c.l.b16 %v918
      %v1207 = vunpack.c.l.b16 %v919
      %v1208 = vunpack.c.l.b16 %v920
      %v1209 = vunpack.c.l.b16 %v921
      %v1210 = vunpack.c.l.b16 %v922
      %v1211 = vunpack.c.l.b16 %v923
      %v1212 = vunpack.c.l.b16 %v924
      %v1213 = vunpack.c.l.b16 %v925
      %v1214 = vunpack.c.l.b16 %v926
      %v1215 = vunpack.c.l.b16 %v927
      %v1216 = vunpack.c.l.b16 %v928
      %v1217 = vunpack.c.l.b16 %v929
      %v1218 = vunpack.c.l.b16 %v930
      %v1219 = vunpack.c.l.b16 %v931
      %v1220 = vunpack.c.l.b16 %v932
      %v1221 = vunpack.c.l.b16 %v933
      %v1222 = vunpack.c.l.b16 %v934
      %v1223 = vunpack.c.l.b16 %v935
      %v1224 = vunpack.c.l.b16 %v936
      %v1225 = vunpack.c.l.b16 %v937
      %v1226 = vunpack.c.l.b16 %v938
      %v1227 = vunpack.c.l.b16 %v939
      %v1228 = vunpack.c.l.b16 %v940
      %v1229 = vunpack.c.l.b16 %v941
      %v1230 = vunpack.c.l.b16 %v942
      %v1231 = vunpack.c.l.b16 %v943
      %v1232 = vunpack.c.l.b16 %v944
      %v1233 = vunpack.c.l.b16 %v945
      %v1234 = vunpack.c.l.b16 %v946
      %v1235 = vunpack.c.l.b16 %v947
      %v1236 = vunpack.c.l.b16 %v948
      %v1237 = vunpack.c.l.b16 %v949
      %v1238 = vunpack.c.l.b16 %v950
      %v1239 = vunpack.c.l.b16 %v951
      %v1240 = vunpack.c.l.b16 %v952
      %v1241 = vunpack.c.l.b16 %v953
      %v1242 = vunpack.c.l.b16 %v954
      %v1243 = vunpack.c.l.b16 %v955
      %v1244 = vunpack.c.l.b16 %v956
      %v1245 = vunpack.c.l.b16 %v957
      %v1246 = vunpack.c.l.b16 %v958
      %v1247 = vunpack.c.l.b16 %v959
      %v1248 = vunpack.c.l.b16 %v960
      %v1249 = vunpack.c.l.b16 %v961
      %v1250 = vunpack.c.l.b16 %v962
      %v1251 = vunpack.c.l.b16 %v963
      %v1252 = vunpack.c.l.b16 %v964
      %v1253 = vunpack.c.l.b16 %v965
      %v1254 = vunpack.c.l.b16 %v966
      %v1255 = vunpack.c.l.b16 %v967
      %v1256 = vunpack.c.l.b16 %v968
      %v1257 = vunpack.c.l.b16 %v969
      %v1258 = vunpack.c.l.b16 %v970
      %v1259 = vunpack.c.l.b16 %v971
      %v1260 = vunpack.c.l.b16 %v972
      %v1261 = vunpack.c.l.b16 %v973
      %v1262 = vunpack.c.l.b16 %v974
      %v1263 = vunpack.c.l.b16 %v975
      %v1264 = vunpack.c.l.b16 %v976
      %v1265 = vunpack.c.l.b16 %v977
      %v1266 = vunpack.c.l.b16 %v978
      %v1267 = vunpack.c.l.b16 %v979
      %v1268 = vunpack.c.l.b16 %v980
      %v1269 = vunpack.c.l.b16 %v981
      %v1270 = vunpack.c.l.b16 %v982
      %v1271 = vunpack.c.l.b16 %v983
      %v1272 = vunpack.c.l.b16 %v984
      %v1273 = vunpack.c.l.b16 %v985
      %v1274 = vunpack.c.l.b16 %v986
      %v1275 = vunpack.c.l.b16 %v987
      %v1276 = vunpack.c.l.b16 %v988
      %v1277 = vunpack.c.l.b16 %v989
      %v1278 = vunpack.c.l.b16 %v990
      %v1279 = vunpack.c.l.b16 %v991
      %v1280 = vunpack.c.l.b16 %v992
      %v1281 = vunpack.c.l.b16 %v993
      %v1282 = vunpack.c.l.b16 %v994
      %v1283 = vunpack.c.l.b16 %v995
      %v1284 = vunpack.c.l.b16 %v996
      %v1285 = vunpack.c.l.b16 %v997
      %v1286 = vunpack.c.l.b16 %v998
      %v1287 = vunpack.c.l.b16 %v999
      %v1288 = vunpack.c.l.b16 %v1000
      %v1289 = vpack.c.b16 %v1146, %v1145
      %v1290 = vpack.c.b16 %v1148, %v1147
      %v1291 = vpack.c.b16 %v1150, %v1149
      %v1292 = vpack.c.b16 %v1152, %v1151
      %v1293 = vpack.c.b16 %v1154, %v1153
      %v1294 = vpack.c.b16 %v1156, %v1155
      %v1295 = vpack.c.b16 %v1158, %v1157
      %v1296 = vpack.c.b16 %v1160, %v1159
      %v1297 = vpack.c.b16 %v1162, %v1161
      %v1298 = vpack.c.b16 %v1164, %v1163
      %v1299 = vpack.c.b16 %v1166, %v1165
      %v1300 = vpack.c.b16 %v1168, %v1167
      %v1301 = vpack.c.b16 %v1170, %v1169
      %v1302 = vpack.c.b16 %v1172, %v1171
      %v1303 = vpack.c.b16 %v1174, %v1173
      %v1304 = vpack.c.b16 %v1176, %v1175
      %v1305 = vpack.c.b16 %v1178, %v1177
      %v1306 = vpack.c.b16 %v1180, %v1179
      %v1307 = vpack.c.b16 %v1182, %v1181
      %v1308 = vpack.c.b16 %v1184, %v1183
      %v1309 = vpack.c.b16 %v1186, %v1185
      %v1310 = vpack.c.b16 %v1188, %v1187
      %v1311 = vpack.c.b16 %v1190, %v1189
      %v1312 = vpack.c.b16 %v1192, %v1191
      %v1313 = vpack.c.b16 %v1194, %v1193
      %v1314 = vpack.c.b16 %v1196, %v1195
      %v1315 = vpack.c.b16 %v1198, %v1197
      %v1316 = vpack.c.b16 %v1200, %v1199
      %v1317 = vpack.c.b16 %v1202, %v1201
      %v1318 = vpack.c.b16 %v1204, %v1203
      %v1319 = vpack.c.b16 %v1206, %v1205
      %v1320 = vpack.c.b16 %v1208, %v1207
      %v1321 = vpack.c.b16 %v1210, %v1209
      %v1322 = vpack.c.b16 %v1212, %v1211
      %v1323 = vpack.c.b16 %v1214, %v1213
      %v1324 = vpack.c.b16 %v1216, %v1215
      %v1325 = vpack.c.b16 %v1218, %v1217
      %v1326 = vpack.c.b16 %v1220, %v1219
      %v1327 = vpack.c.b16 %v1222, %v1221
      %v1328 = vpack.c.b16 %v1224, %v1223
      %v1329 = vpack.c.b16 %v1226, %v1225
      %v1330 = vpack.c.b16 %v1228, %v1227
      %v1331 = vpack.c.b16 %v1230, %v1229
      %v1332 = vpack.c.b16 %v1232, %v1231
      %v1333 = vpack.c.b16 %v1234, %v1233
      %v1334 = vpack.c.b16 %v1236, %v1235
      %v1335 = vpack.c.b16 %v1238, %v1237
      %v1336 = vpack.c.b16 %v1240, %v1239
      %v1337 = vpack.c.b16 %v1242, %v1241
      %v1338 = vpack.c.b16 %v1244, %v1243
      %v1339 = vpack.c.b16 %v1246, %v1245
      %v1340 = vpack.c.b16 %v1248, %v1247
      %v1341 = vpack.c.b16 %v1250, %v1249
      %v1342 = vpack.c.b16 %v1252, %v1251
      %v1343 = vpack.c.b16 %v1254, %v1253
      %v1344 = vpack.c.b16 %v1256, %v1255
      %v1345 = vpack.c.b16 %v1258, %v1257
      %v1346 = vpack.c.b16 %v1260, %v1259
      %v1347 = vpack.c.b16 %v1262, %v1261
      %v1348 = vpack.c.b16 %v1264, %v1263
      %v1349 = vpack.c.b16 %v1266, %v1265
      %v1350 = vpack.c.b16 %v1268, %v1267
      %v1351 = vpack.c.b16 %v1270, %v1269
      %v1352 = vpack.c.b16 %v1272, %v1271
      %v1353 = vpack.c.b16 %v1274, %v1273
      %v1354 = vpack.c.b16 %v1276, %v1275
      %v1355 = vpack.c.b16 %v1278, %v1277
      %v1356 = vpack.c.b16 %v1280, %v1279
      %v1357 = vpack.c.b16 %v1282, %v1281
      %v1358 = vpack.c.b16 %v1284, %v1283
      %v1359 = vpack.c.b16 %v1286, %v1285
      %v1360 = vpack.c.b16 %v1288, %v1287
      %1433 = vmatpush.bf16.msra.mxu0 %v1296
      %1434 = vmatpush.bf16.msra.mxu0 %v1295
      %1435 = vmatpush.bf16.msra.mxu0 %v1294
      %1436 = vmatpush.bf16.msra.mxu0 %v1293
      %1437 = vmatpush.bf16.msra.mxu0 %v1292
      %1438 = vmatpush.bf16.msra.mxu0 %v1291
      %1439 = vmatpush.bf16.msra.mxu0 %v1290
      %1440 = vmatpush.bf16.msra.mxu0 %v1289
      %1441 = vmatmul.bf16.gmra.mxu0 %v733
      %v1442 = vpop.f32.mrf.mxu0
      %v1443 = vadd.f32 0.0, %v1442
      %v1444 = vpop.f32.mrf.mxu0
      %v1445 = vadd.f32 0.0, %v1444
      %1446 = vmatmul.bf16.gmra.mxu0 %v734
      %v1447 = vpop.f32.mrf.mxu0
      %v1448 = vadd.f32 0.0, %v1447
      %v1449 = vpop.f32.mrf.mxu0
      %v1450 = vadd.f32 0.0, %v1449
      %1451 = vmatmul.bf16.gmra.mxu0 %v735
      %v1452 = vpop.f32.mrf.mxu0
      %v1453 = vadd.f32 0.0, %v1452
      %v1454 = vpop.f32.mrf.mxu0
      %v1455 = vadd.f32 0.0, %v1454
      %1456 = vmatmul.bf16.gmra.mxu0 %v736
      %v1457 = vpop.f32.mrf.mxu0
      %v1458 = vadd.f32 0.0, %v1457
      %v1459 = vpop.f32.mrf.mxu0
      %v1460 = vadd.f32 0.0, %v1459
      %1461 = vmatmul.bf16.gmra.mxu0 %v737
      %v1462 = vpop.f32.mrf.mxu0
      %v1463 = vadd.f32 0.0, %v1462
      %v1464 = vpop.f32.mrf.mxu0
      %v1465 = vadd.f32 0.0, %v1464
      %1466 = vmatmul.bf16.gmra.mxu0 %v738
      %v1467 = vpop.f32.mrf.mxu0
      %v1468 = vadd.f32 0.0, %v1467
      %v1469 = vpop.f32.mrf.mxu0
      %v1470 = vadd.f32 0.0, %v1469
      %1471 = vmatmul.bf16.gmra.mxu0 %v739
      %v1472 = vpop.f32.mrf.mxu0
      %v1473 = vadd.f32 0.0, %v1472
      %v1474 = vpop.f32.mrf.mxu0
      %v1475 = vadd.f32 0.0, %v1474
      %1476 = vmatmul.bf16.gmra.mxu0 %v740
      %v1477 = vpop.f32.mrf.mxu0
      %v1478 = vadd.f32 0.0, %v1477
      %v1479 = vpop.f32.mrf.mxu0
      %v1480 = vadd.f32 0.0, %v1479
      %1481 = vmatmul.bf16.gmra.mxu0 %v741
      %v1482 = vpop.f32.mrf.mxu0
      %v1483 = vadd.f32 0.0, %v1482
      %v1484 = vpop.f32.mrf.mxu0
      %v1485 = vadd.f32 0.0, %v1484
      %1486 = vmatmul.bf16.gmra.mxu0 %v742
      %v1487 = vpop.f32.mrf.mxu0
      %v1488 = vadd.f32 0.0, %v1487
      %v1489 = vpop.f32.mrf.mxu0
      %v1490 = vadd.f32 0.0, %v1489
      %1491 = vdwg.mxu0
      %1492 = vmatpush.bf16.msra.mxu0 %v1304
      %1493 = vmatpush.bf16.msra.mxu0 %v1303
      %1494 = vmatpush.bf16.msra.mxu0 %v1302
      %1495 = vmatpush.bf16.msra.mxu0 %v1301
      %1496 = vmatpush.bf16.msra.mxu0 %v1300
      %1497 = vmatpush.bf16.msra.mxu0 %v1299
      %1498 = vmatpush.bf16.msra.mxu0 %v1298
      %1499 = vmatpush.bf16.msra.mxu0 %v1297
      %1500 = vmatmul.bf16.gmra.mxu0 %v773
      %v1501 = vpop.f32.mrf.mxu0
      %v1502 = vadd.f32 %v1443, %v1501
      %v1503 = vpop.f32.mrf.mxu0
      %v1504 = vadd.f32 %v1445, %v1503
      %1505 = vmatmul.bf16.gmra.mxu0 %v774
      %v1506 = vpop.f32.mrf.mxu0
      %v1507 = vadd.f32 %v1448, %v1506
      %v1508 = vpop.f32.mrf.mxu0
      %v1509 = vadd.f32 %v1450, %v1508
      %1510 = vmatmul.bf16.gmra.mxu0 %v775
      %v1511 = vpop.f32.mrf.mxu0
      %v1512 = vadd.f32 %v1453, %v1511
      %v1513 = vpop.f32.mrf.mxu0
      %v1514 = vadd.f32 %v1455, %v1513
      %1515 = vmatmul.bf16.gmra.mxu0 %v776
      %v1516 = vpop.f32.mrf.mxu0
      %v1517 = vadd.f32 %v1458, %v1516
      %v1518 = vpop.f32.mrf.mxu0
      %v1519 = vadd.f32 %v1460, %v1518
      %1520 = vmatmul.bf16.gmra.mxu0 %v777
      %v1521 = vpop.f32.mrf.mxu0
      %v1522 = vadd.f32 %v1463, %v1521
      %v1523 = vpop.f32.mrf.mxu0
      %v1524 = vadd.f32 %v1465, %v1523
      %1525 = vmatmul.bf16.gmra.mxu0 %v778
      %v1526 = vpop.f32.mrf.mxu0
      %v1527 = vadd.f32 %v1468, %v1526
      %v1528 = vpop.f32.mrf.mxu0
      %v1529 = vadd.f32 %v1470, %v1528
      %1530 = vmatmul.bf16.gmra.mxu0 %v779
      %v1531 = vpop.f32.mrf.mxu0
      %v1532 = vadd.f32 %v1473, %v1531
      %v1533 = vpop.f32.mrf.mxu0
      %v1534 = vadd.f32 %v1475, %v1533
      %1535 = vmatmul.bf16.gmra.mxu0 %v780
      %v1536 = vpop.f32.mrf.mxu0
      %v1537 = vadd.f32 %v1478, %v1536
      %v1538 = vpop.f32.mrf.mxu0
      %v1539 = vadd.f32 %v1480, %v1538
      %1540 = vmatmul.bf16.gmra.mxu0 %v781
      %v1541 = vpop.f32.mrf.mxu0
      %v1542 = vadd.f32 %v1483, %v1541
      %v1543 = vpop.f32.mrf.mxu0
      %v1544 = vadd.f32 %v1485, %v1543
      %1545 = vmatmul.bf16.gmra.mxu0 %v782
      %v1546 = vpop.f32.mrf.mxu0
      %v1547 = vadd.f32 %v1488, %v1546
      %v1548 = vpop.f32.mrf.mxu0
      %v1549 = vadd.f32 %v1490, %v1548
      %1550 = vdwg.mxu0
      %1551 = vmatpush.bf16.msra.mxu0 %v1312
      %1552 = vmatpush.bf16.msra.mxu0 %v1311
      %1553 = vmatpush.bf16.msra.mxu0 %v1310
      %1554 = vmatpush.bf16.msra.mxu0 %v1309
      %1555 = vmatpush.bf16.msra.mxu0 %v1308
      %1556 = vmatpush.bf16.msra.mxu0 %v1307
      %1557 = vmatpush.bf16.msra.mxu0 %v1306
      %1558 = vmatpush.bf16.msra.mxu0 %v1305
      %1559 = vmatmul.bf16.gmra.mxu0 %v813
      %v1560 = vpop.f32.mrf.mxu0
      %v1561 = vadd.f32 %v1502, %v1560
      %v1562 = vpop.f32.mrf.mxu0
      %v1563 = vadd.f32 %v1504, %v1562
      %1564 = vmatmul.bf16.gmra.mxu0 %v814
      %v1565 = vpop.f32.mrf.mxu0
      %v1566 = vadd.f32 %v1507, %v1565
      %v1567 = vpop.f32.mrf.mxu0
      %v1568 = vadd.f32 %v1509, %v1567
      %1569 = vmatmul.bf16.gmra.mxu0 %v815
      %v1570 = vpop.f32.mrf.mxu0
      %v1571 = vadd.f32 %v1512, %v1570
      %v1572 = vpop.f32.mrf.mxu0
      %v1573 = vadd.f32 %v1514, %v1572
      %1574 = vmatmul.bf16.gmra.mxu0 %v816
      %v1575 = vpop.f32.mrf.mxu0
      %v1576 = vadd.f32 %v1517, %v1575
      %v1577 = vpop.f32.mrf.mxu0
      %v1578 = vadd.f32 %v1519, %v1577
      %1579 = vmatmul.bf16.gmra.mxu0 %v817
      %v1580 = vpop.f32.mrf.mxu0
      %v1581 = vadd.f32 %v1522, %v1580
      %v1582 = vpop.f32.mrf.mxu0
      %v1583 = vadd.f32 %v1524, %v1582
      %1584 = vmatmul.bf16.gmra.mxu0 %v818
      %v1585 = vpop.f32.mrf.mxu0
      %v1586 = vadd.f32 %v1527, %v1585
      %v1587 = vpop.f32.mrf.mxu0
      %v1588 = vadd.f32 %v1529, %v1587
      %1589 = vmatmul.bf16.gmra.mxu0 %v819
      %v1590 = vpop.f32.mrf.mxu0
      %v1591 = vadd.f32 %v1532, %v1590
      %v1592 = vpop.f32.mrf.mxu0
      %v1593 = vadd.f32 %v1534, %v1592
      %1594 = vmatmul.bf16.gmra.mxu0 %v820
      %v1595 = vpop.f32.mrf.mxu0
      %v1596 = vadd.f32 %v1537, %v1595
      %v1597 = vpop.f32.mrf.mxu0
      %v1598 = vadd.f32 %v1539, %v1597
      %1599 = vmatmul.bf16.gmra.mxu0 %v821
      %v1600 = vpop.f32.mrf.mxu0
      %v1601 = vadd.f32 %v1542, %v1600
      %v1602 = vpop.f32.mrf.mxu0
      %v1603 = vadd.f32 %v1544, %v1602
      %1604 = vmatmul.bf16.gmra.mxu0 %v822
      %v1605 = vpop.f32.mrf.mxu0
      %v1606 = vadd.f32 %v1547, %v1605
      %v1607 = vpop.f32.mrf.mxu0
      %v1608 = vadd.f32 %v1549, %v1607
      %1609 = vdwg.mxu0
      %1610 = vmatpush.bf16.msra.mxu0 %v1320
      %1611 = vmatpush.bf16.msra.mxu0 %v1319
      %1612 = vmatpush.bf16.msra.mxu0 %v1318
      %1613 = vmatpush.bf16.msra.mxu0 %v1317
      %1614 = vmatpush.bf16.msra.mxu0 %v1316
      %1615 = vmatpush.bf16.msra.mxu0 %v1315
      %1616 = vmatpush.bf16.msra.mxu0 %v1314
      %1617 = vmatpush.bf16.msra.mxu0 %v1313
      %1618 = vmatmul.bf16.gmra.mxu0 %v734
      %v1619 = vpop.f32.mrf.mxu0
      %v1620 = vadd.f32 %v1561, %v1619
      %v1621 = vpop.f32.mrf.mxu0
      %v1622 = vadd.f32 %v1563, %v1621
      %1623 = vmatmul.bf16.gmra.mxu0 %v735
      %v1624 = vpop.f32.mrf.mxu0
      %v1625 = vadd.f32 %v1566, %v1624
      %v1626 = vpop.f32.mrf.mxu0
      %v1627 = vadd.f32 %v1568, %v1626
      %1628 = vmatmul.bf16.gmra.mxu0 %v736
      %v1629 = vpop.f32.mrf.mxu0
      %v1630 = vadd.f32 %v1571, %v1629
      %v1631 = vpop.f32.mrf.mxu0
      %v1632 = vadd.f32 %v1573, %v1631
      %1633 = vmatmul.bf16.gmra.mxu0 %v737
      %v1634 = vpop.f32.mrf.mxu0
      %v1635 = vadd.f32 %v1576, %v1634
      %v1636 = vpop.f32.mrf.mxu0
      %v1637 = vadd.f32 %v1578, %v1636
      %1638 = vmatmul.bf16.gmra.mxu0 %v738
      %v1639 = vpop.f32.mrf.mxu0
      %v1640 = vadd.f32 %v1581, %v1639
      %v1641 = vpop.f32.mrf.mxu0
      %v1642 = vadd.f32 %v1583, %v1641
      %1643 = vmatmul.bf16.gmra.mxu0 %v739
      %v1644 = vpop.f32.mrf.mxu0
      %v1645 = vadd.f32 %v1586, %v1644
      %v1646 = vpop.f32.mrf.mxu0
      %v1647 = vadd.f32 %v1588, %v1646
      %1648 = vmatmul.bf16.gmra.mxu0 %v740
      %v1649 = vpop.f32.mrf.mxu0
      %v1650 = vadd.f32 %v1591, %v1649
      %v1651 = vpop.f32.mrf.mxu0
      %v1652 = vadd.f32 %v1593, %v1651
      %1653 = vmatmul.bf16.gmra.mxu0 %v741
      %v1654 = vpop.f32.mrf.mxu0
      %v1655 = vadd.f32 %v1596, %v1654
      %v1656 = vpop.f32.mrf.mxu0
      %v1657 = vadd.f32 %v1598, %v1656
      %1658 = vmatmul.bf16.gmra.mxu0 %v742
      %v1659 = vpop.f32.mrf.mxu0
      %v1660 = vadd.f32 %v1601, %v1659
      %v1661 = vpop.f32.mrf.mxu0
      %v1662 = vadd.f32 %v1603, %v1661
      %1663 = vmatmul.bf16.gmra.mxu0 %v835
      %v1664 = vpop.f32.mrf.mxu0
      %v1665 = vadd.f32 %v1606, %v1664
      %v1666 = vpop.f32.mrf.mxu0
      %v1667 = vadd.f32 %v1608, %v1666
      %1668 = vdwg.mxu0
      %1669 = vmatpush.bf16.msra.mxu0 %v1328
      %1670 = vmatpush.bf16.msra.mxu0 %v1327
      %1671 = vmatpush.bf16.msra.mxu0 %v1326
      %1672 = vmatpush.bf16.msra.mxu0 %v1325
      %1673 = vmatpush.bf16.msra.mxu0 %v1324
      %1674 = vmatpush.bf16.msra.mxu0 %v1323
      %1675 = vmatpush.bf16.msra.mxu0 %v1322
      %1676 = vmatpush.bf16.msra.mxu0 %v1321
      %1677 = vmatmul.bf16.gmra.mxu0 %v774
      %v1678 = vpop.f32.mrf.mxu0
      %v1679 = vadd.f32 %v1620, %v1678
      %v1680 = vpop.f32.mrf.mxu0
      %v1681 = vadd.f32 %v1622, %v1680
      %1682 = vmatmul.bf16.gmra.mxu0 %v775
      %v1683 = vpop.f32.mrf.mxu0
      %v1684 = vadd.f32 %v1625, %v1683
      %v1685 = vpop.f32.mrf.mxu0
      %v1686 = vadd.f32 %v1627, %v1685
      %1687 = vmatmul.bf16.gmra.mxu0 %v776
      %v1688 = vpop.f32.mrf.mxu0
      %v1689 = vadd.f32 %v1630, %v1688
      %v1690 = vpop.f32.mrf.mxu0
      %v1691 = vadd.f32 %v1632, %v1690
      %1692 = vmatmul.bf16.gmra.mxu0 %v777
      %v1693 = vpop.f32.mrf.mxu0
      %v1694 = vadd.f32 %v1635, %v1693
      %v1695 = vpop.f32.mrf.mxu0
      %v1696 = vadd.f32 %v1637, %v1695
      %1697 = vmatmul.bf16.gmra.mxu0 %v778
      %v1698 = vpop.f32.mrf.mxu0
      %v1699 = vadd.f32 %v1640, %v1698
      %v1700 = vpop.f32.mrf.mxu0
      %v1701 = vadd.f32 %v1642, %v1700
      %1702 = vmatmul.bf16.gmra.mxu0 %v779
      %v1703 = vpop.f32.mrf.mxu0
      %v1704 = vadd.f32 %v1645, %v1703
      %v1705 = vpop.f32.mrf.mxu0
      %v1706 = vadd.f32 %v1647, %v1705
      %1707 = vmatmul.bf16.gmra.mxu0 %v780
      %v1708 = vpop.f32.mrf.mxu0
      %v1709 = vadd.f32 %v1650, %v1708
      %v1710 = vpop.f32.mrf.mxu0
      %v1711 = vadd.f32 %v1652, %v1710
      %1712 = vmatmul.bf16.gmra.mxu0 %v781
      %v1713 = vpop.f32.mrf.mxu0
      %v1714 = vadd.f32 %v1655, %v1713
      %v1715 = vpop.f32.mrf.mxu0
      %v1716 = vadd.f32 %v1657, %v1715
      %1717 = vmatmul.bf16.gmra.mxu0 %v782
      %v1718 = vpop.f32.mrf.mxu0
      %v1719 = vadd.f32 %v1660, %v1718
      %v1720 = vpop.f32.mrf.mxu0
      %v1721 = vadd.f32 %v1662, %v1720
      %1722 = vmatmul.bf16.gmra.mxu0 %v839
      %v1723 = vpop.f32.mrf.mxu0
      %v1724 = vadd.f32 %v1665, %v1723
      %v1725 = vpop.f32.mrf.mxu0
      %v1726 = vadd.f32 %v1667, %v1725
      %1727 = vdwg.mxu0
      %1728 = vmatpush.bf16.msra.mxu0 %v1336
      %1729 = vmatpush.bf16.msra.mxu0 %v1335
      %1730 = vmatpush.bf16.msra.mxu0 %v1334
      %1731 = vmatpush.bf16.msra.mxu0 %v1333
      %1732 = vmatpush.bf16.msra.mxu0 %v1332
      %1733 = vmatpush.bf16.msra.mxu0 %v1331
      %1734 = vmatpush.bf16.msra.mxu0 %v1330
      %1735 = vmatpush.bf16.msra.mxu0 %v1329
      %1736 = vmatmul.bf16.gmra.mxu0 %v814
      %v1737 = vpop.f32.mrf.mxu0
      %v1738 = vadd.f32 %v1679, %v1737
      %v1739 = vpop.f32.mrf.mxu0
      %v1740 = vadd.f32 %v1681, %v1739
      %1741 = vmatmul.bf16.gmra.mxu0 %v815
      %v1742 = vpop.f32.mrf.mxu0
      %v1743 = vadd.f32 %v1684, %v1742
      %v1744 = vpop.f32.mrf.mxu0
      %v1745 = vadd.f32 %v1686, %v1744
      %1746 = vmatmul.bf16.gmra.mxu0 %v816
      %v1747 = vpop.f32.mrf.mxu0
      %v1748 = vadd.f32 %v1689, %v1747
      %v1749 = vpop.f32.mrf.mxu0
      %v1750 = vadd.f32 %v1691, %v1749
      %1751 = vmatmul.bf16.gmra.mxu0 %v817
      %v1752 = vpop.f32.mrf.mxu0
      %v1753 = vadd.f32 %v1694, %v1752
      %v1754 = vpop.f32.mrf.mxu0
      %v1755 = vadd.f32 %v1696, %v1754
      %1756 = vmatmul.bf16.gmra.mxu0 %v818
      %v1757 = vpop.f32.mrf.mxu0
      %v1758 = vadd.f32 %v1699, %v1757
      %v1759 = vpop.f32.mrf.mxu0
      %v1760 = vadd.f32 %v1701, %v1759
      %1761 = vmatmul.bf16.gmra.mxu0 %v819
      %v1762 = vpop.f32.mrf.mxu0
      %v1763 = vadd.f32 %v1704, %v1762
      %v1764 = vpop.f32.mrf.mxu0
      %v1765 = vadd.f32 %v1706, %v1764
      %1766 = vmatmul.bf16.gmra.mxu0 %v820
      %v1767 = vpop.f32.mrf.mxu0
      %v1768 = vadd.f32 %v1709, %v1767
      %v1769 = vpop.f32.mrf.mxu0
      %v1770 = vadd.f32 %v1711, %v1769
      %1771 = vmatmul.bf16.gmra.mxu0 %v821
      %v1772 = vpop.f32.mrf.mxu0
      %v1773 = vadd.f32 %v1714, %v1772
      %v1774 = vpop.f32.mrf.mxu0
      %v1775 = vadd.f32 %v1716, %v1774
      %1776 = vmatmul.bf16.gmra.mxu0 %v822
      %v1777 = vpop.f32.mrf.mxu0
      %v1778 = vadd.f32 %v1719, %v1777
      %v1779 = vpop.f32.mrf.mxu0
      %v1780 = vadd.f32 %v1721, %v1779
      %1781 = vmatmul.bf16.gmra.mxu0 %v843
      %v1782 = vpop.f32.mrf.mxu0
      %v1783 = vadd.f32 %v1724, %v1782
      %v1784 = vpop.f32.mrf.mxu0
      %v1785 = vadd.f32 %v1726, %v1784
      %1786 = vdwg.mxu0
      %1787 = vmatpush.bf16.msra.mxu0 %v1344
      %1788 = vmatpush.bf16.msra.mxu0 %v1343
      %1789 = vmatpush.bf16.msra.mxu0 %v1342
      %1790 = vmatpush.bf16.msra.mxu0 %v1341
      %1791 = vmatpush.bf16.msra.mxu0 %v1340
      %1792 = vmatpush.bf16.msra.mxu0 %v1339
      %1793 = vmatpush.bf16.msra.mxu0 %v1338
      %1794 = vmatpush.bf16.msra.mxu0 %v1337
      %1795 = vmatmul.bf16.gmra.mxu0 %v735
      %v1796 = vpop.f32.mrf.mxu0
      %v1797 = vadd.f32 %v1738, %v1796
      %v1798 = vpop.f32.mrf.mxu0
      %v1799 = vadd.f32 %v1740, %v1798
      %1800 = vmatmul.bf16.gmra.mxu0 %v736
      %v1801 = vpop.f32.mrf.mxu0
      %v1802 = vadd.f32 %v1743, %v1801
      %v1803 = vpop.f32.mrf.mxu0
      %v1804 = vadd.f32 %v1745, %v1803
      %1805 = vmatmul.bf16.gmra.mxu0 %v737
      %v1806 = vpop.f32.mrf.mxu0
      %v1807 = vadd.f32 %v1748, %v1806
      %v1808 = vpop.f32.mrf.mxu0
      %v1809 = vadd.f32 %v1750, %v1808
      %1810 = vmatmul.bf16.gmra.mxu0 %v738
      %v1811 = vpop.f32.mrf.mxu0
      %v1812 = vadd.f32 %v1753, %v1811
      %v1813 = vpop.f32.mrf.mxu0
      %v1814 = vadd.f32 %v1755, %v1813
      %1815 = vmatmul.bf16.gmra.mxu0 %v739
      %v1816 = vpop.f32.mrf.mxu0
      %v1817 = vadd.f32 %v1758, %v1816
      %v1818 = vpop.f32.mrf.mxu0
      %v1819 = vadd.f32 %v1760, %v1818
      %1820 = vmatmul.bf16.gmra.mxu0 %v740
      %v1821 = vpop.f32.mrf.mxu0
      %v1822 = vadd.f32 %v1763, %v1821
      %v1823 = vpop.f32.mrf.mxu0
      %v1824 = vadd.f32 %v1765, %v1823
      %1825 = vmatmul.bf16.gmra.mxu0 %v741
      %v1826 = vpop.f32.mrf.mxu0
      %v1827 = vadd.f32 %v1768, %v1826
      %v1828 = vpop.f32.mrf.mxu0
      %v1829 = vadd.f32 %v1770, %v1828
      %1830 = vmatmul.bf16.gmra.mxu0 %v742
      %v1831 = vpop.f32.mrf.mxu0
      %v1832 = vadd.f32 %v1773, %v1831
      %v1833 = vpop.f32.mrf.mxu0
      %v1834 = vadd.f32 %v1775, %v1833
      %1835 = vmatmul.bf16.gmra.mxu0 %v835
      %v1836 = vpop.f32.mrf.mxu0
      %v1837 = vadd.f32 %v1778, %v1836
      %v1838 = vpop.f32.mrf.mxu0
      %v1839 = vadd.f32 %v1780, %v1838
      %1840 = vmatmul.bf16.gmra.mxu0 %v847
      %v1841 = vpop.f32.mrf.mxu0
      %v1842 = vadd.f32 %v1783, %v1841
      %v1843 = vpop.f32.mrf.mxu0
      %v1844 = vadd.f32 %v1785, %v1843
      %1845 = vdwg.mxu0
      %1846 = vmatpush.bf16.msra.mxu0 %v1352
      %1847 = vmatpush.bf16.msra.mxu0 %v1351
      %1848 = vmatpush.bf16.msra.mxu0 %v1350
      %1849 = vmatpush.bf16.msra.mxu0 %v1349
      %1850 = vmatpush.bf16.msra.mxu0 %v1348
      %1851 = vmatpush.bf16.msra.mxu0 %v1347
      %1852 = vmatpush.bf16.msra.mxu0 %v1346
      %1853 = vmatpush.bf16.msra.mxu0 %v1345
      %1854 = vmatmul.bf16.gmra.mxu0 %v775
      %v1855 = vpop.f32.mrf.mxu0
      %v1856 = vadd.f32 %v1797, %v1855
      %v1857 = vpop.f32.mrf.mxu0
      %v1858 = vadd.f32 %v1799, %v1857
      %1859 = vmatmul.bf16.gmra.mxu0 %v776
      %v1860 = vpop.f32.mrf.mxu0
      %v1861 = vadd.f32 %v1802, %v1860
      %v1862 = vpop.f32.mrf.mxu0
      %v1863 = vadd.f32 %v1804, %v1862
      %1864 = vmatmul.bf16.gmra.mxu0 %v777
      %v1865 = vpop.f32.mrf.mxu0
      %v1866 = vadd.f32 %v1807, %v1865
      %v1867 = vpop.f32.mrf.mxu0
      %v1868 = vadd.f32 %v1809, %v1867
      %1869 = vmatmul.bf16.gmra.mxu0 %v778
      %v1870 = vpop.f32.mrf.mxu0
      %v1871 = vadd.f32 %v1812, %v1870
      %v1872 = vpop.f32.mrf.mxu0
      %v1873 = vadd.f32 %v1814, %v1872
      %1874 = vmatmul.bf16.gmra.mxu0 %v779
      %v1875 = vpop.f32.mrf.mxu0
      %v1876 = vadd.f32 %v1817, %v1875
      %v1877 = vpop.f32.mrf.mxu0
      %v1878 = vadd.f32 %v1819, %v1877
      %1879 = vmatmul.bf16.gmra.mxu0 %v780
      %v1880 = vpop.f32.mrf.mxu0
      %v1881 = vadd.f32 %v1822, %v1880
      %v1882 = vpop.f32.mrf.mxu0
      %v1883 = vadd.f32 %v1824, %v1882
      %1884 = vmatmul.bf16.gmra.mxu0 %v781
      %v1885 = vpop.f32.mrf.mxu0
      %v1886 = vadd.f32 %v1827, %v1885
      %v1887 = vpop.f32.mrf.mxu0
      %v1888 = vadd.f32 %v1829, %v1887
      %1889 = vmatmul.bf16.gmra.mxu0 %v782
      %v1890 = vpop.f32.mrf.mxu0
      %v1891 = vadd.f32 %v1832, %v1890
      %v1892 = vpop.f32.mrf.mxu0
      %v1893 = vadd.f32 %v1834, %v1892
      %1894 = vmatmul.bf16.gmra.mxu0 %v839
      %v1895 = vpop.f32.mrf.mxu0
      %v1896 = vadd.f32 %v1837, %v1895
      %v1897 = vpop.f32.mrf.mxu0
      %v1898 = vadd.f32 %v1839, %v1897
      %1899 = vmatmul.bf16.gmra.mxu0 %v851
      %v1900 = vpop.f32.mrf.mxu0
      %v1901 = vadd.f32 %v1842, %v1900
      %v1902 = vpop.f32.mrf.mxu0
      %v1903 = vadd.f32 %v1844, %v1902
      %1904 = vdwg.mxu0
      %1905 = vmatpush.bf16.msra.mxu0 %v1360
      %1906 = vmatpush.bf16.msra.mxu0 %v1359
      %1907 = vmatpush.bf16.msra.mxu0 %v1358
      %1908 = vmatpush.bf16.msra.mxu0 %v1357
      %1909 = vmatpush.bf16.msra.mxu0 %v1356
      %1910 = vmatpush.bf16.msra.mxu0 %v1355
      %1911 = vmatpush.bf16.msra.mxu0 %v1354
      %1912 = vmatpush.bf16.msra.mxu0 %v1353
      %1913 = vmatmul.bf16.gmra.mxu0 %v815
      %v1914 = vpop.f32.mrf.mxu0
      %v1915 = vadd.f32 %v1856, %v1914
      %v1916 = vpop.f32.mrf.mxu0
      %v1917 = vadd.f32 %v1858, %v1916
      %1918 = vmatmul.bf16.gmra.mxu0 %v816
      %v1919 = vpop.f32.mrf.mxu0
      %v1920 = vadd.f32 %v1861, %v1919
      %v1921 = vpop.f32.mrf.mxu0
      %v1922 = vadd.f32 %v1863, %v1921
      %1923 = vmatmul.bf16.gmra.mxu0 %v817
      %v1924 = vpop.f32.mrf.mxu0
      %v1925 = vadd.f32 %v1866, %v1924
      %v1926 = vpop.f32.mrf.mxu0
      %v1927 = vadd.f32 %v1868, %v1926
      %1928 = vmatmul.bf16.gmra.mxu0 %v818
      %v1929 = vpop.f32.mrf.mxu0
      %v1930 = vadd.f32 %v1871, %v1929
      %v1931 = vpop.f32.mrf.mxu0
      %v1932 = vadd.f32 %v1873, %v1931
      %1933 = vmatmul.bf16.gmra.mxu0 %v819
      %v1934 = vpop.f32.mrf.mxu0
      %v1935 = vadd.f32 %v1876, %v1934
      %v1936 = vpop.f32.mrf.mxu0
      %v1937 = vadd.f32 %v1878, %v1936
      %1938 = vmatmul.bf16.gmra.mxu0 %v820
      %v1939 = vpop.f32.mrf.mxu0
      %v1940 = vadd.f32 %v1881, %v1939
      %v1941 = vpop.f32.mrf.mxu0
      %v1942 = vadd.f32 %v1883, %v1941
      %1943 = vmatmul.bf16.gmra.mxu0 %v821
      %v1944 = vpop.f32.mrf.mxu0
      %v1945 = vadd.f32 %v1886, %v1944
      %v1946 = vpop.f32.mrf.mxu0
      %v1947 = vadd.f32 %v1888, %v1946
      %1948 = vmatmul.bf16.gmra.mxu0 %v822
      %v1949 = vpop.f32.mrf.mxu0
      %v1950 = vadd.f32 %v1891, %v1949
      %v1951 = vpop.f32.mrf.mxu0
      %v1952 = vadd.f32 %v1893, %v1951
      %1953 = vmatmul.bf16.gmra.mxu0 %v843
      %v1954 = vpop.f32.mrf.mxu0
      %v1955 = vadd.f32 %v1896, %v1954
      %v1956 = vpop.f32.mrf.mxu0
      %v1957 = vadd.f32 %v1898, %v1956
      %1958 = vmatmul.bf16.gmra.mxu0 %v855
      %v1959 = vpop.f32.mrf.mxu0
      %v1960 = vadd.f32 %v1901, %v1959
      %v1961 = vpop.f32.mrf.mxu0
      %v1962 = vadd.f32 %v1903, %v1961
      %1963 = vdwg.mxu0
      %v1964 = vld [vmem:[%s3] sm:$0x1]
      %v1965 = vld [vmem:[%s3 + $0x1] sm:$0x1]
      %v1966 = vperm.slane %v1964, 0
      %v1967 = vmul.f32 %v1915, %v1966
      %v1968 = vmul.f32 %v1917, %v1966
      %v1969 = vmul.f32 %v1920, %v1966
      %v1970 = vmul.f32 %v1922, %v1966
      %v1971 = vmul.f32 %v1925, %v1966
      %v1972 = vmul.f32 %v1927, %v1966
      %v1973 = vmul.f32 %v1930, %v1966
      %v1974 = vmul.f32 %v1932, %v1966
      %v1975 = vmul.f32 %v1935, %v1966
      %v1976 = vmul.f32 %v1937, %v1966
      %v1977 = vmul.f32 %v1940, %v1966
      %v1978 = vmul.f32 %v1942, %v1966
      %v1979 = vmul.f32 %v1945, %v1966
      %v1980 = vmul.f32 %v1947, %v1966
      %v1981 = vmul.f32 %v1950, %v1966
      %v1982 = vmul.f32 %v1952, %v1966
      %v1983 = vmul.f32 %v1955, %v1966
      %v1984 = vmul.f32 %v1957, %v1966
      %v1985 = vmul.f32 %v1960, %v1966
      %v1986 = vmul.f32 %v1962, %v1966
      %v1987 = vperm.slane %v1965, 0
      %v1988 = vadd.f32 %v1967, %v1987
      %v1989 = vadd.f32 %v1968, %v1987
      %v1990 = vadd.f32 %v1969, %v1987
      %v1991 = vadd.f32 %v1970, %v1987
      %v1992 = vadd.f32 %v1971, %v1987
      %v1993 = vadd.f32 %v1972, %v1987
      %v1994 = vadd.f32 %v1973, %v1987
      %v1995 = vadd.f32 %v1974, %v1987
      %v1996 = vadd.f32 %v1975, %v1987
      %v1997 = vadd.f32 %v1976, %v1987
      %v1998 = vadd.f32 %v1977, %v1987
      %v1999 = vadd.f32 %v1978, %v1987
      %v2000 = vadd.f32 %v1979, %v1987
      %v2001 = vadd.f32 %v1980, %v1987
      %v2002 = vadd.f32 %v1981, %v1987
      %v2003 = vadd.f32 %v1982, %v1987
      %v2004 = vadd.f32 %v1983, %v1987
      %v2005 = vadd.f32 %v1984, %v1987
      %v2006 = vadd.f32 %v1985, %v1987
      %v2007 = vadd.f32 %v1986, %v1987
      %v2008 = vmax.f32 %v1988, 0.0
      %v2009 = vmax.f32 %v1989, 0.0
      %v2010 = vmax.f32 %v1990, 0.0
      %v2011 = vmax.f32 %v1991, 0.0
      %v2012 = vmax.f32 %v1992, 0.0
      %v2013 = vmax.f32 %v1993, 0.0
      %v2014 = vmax.f32 %v1994, 0.0
      %v2015 = vmax.f32 %v1995, 0.0
      %v2016 = vmax.f32 %v1996, 0.0
      %v2017 = vmax.f32 %v1997, 0.0
      %v2018 = vmax.f32 %v1998, 0.0
      %v2019 = vmax.f32 %v1999, 0.0
      %v2020 = vmax.f32 %v2000, 0.0
      %v2021 = vmax.f32 %v2001, 0.0
      %v2022 = vmax.f32 %v2002, 0.0
      %v2023 = vmax.f32 %v2003, 0.0
      %v2024 = vmax.f32 %v2004, 0.0
      %v2025 = vmax.f32 %v2005, 0.0
      %v2026 = vmax.f32 %v2006, 0.0
      %v2027 = vmax.f32 %v2007, 0.0
      %s2028 = ssub.s32 %s224, 1
      %v2029 = vstv %s2028
      %v2030 = vadd.s32 %v2029, 1
      %v2031 = vadd.s32 %v2029, 2
      %v2032 = vadd.s32 %v2029, 3
      %v2033 = vadd.s32 %v2029, 4
      %v2034 = vadd.s32 %v2029, 5
      %v2035 = vadd.s32 %v2029, 6
      %v2036 = vadd.s32 %v2029, 7
      %v2037 = vadd.s32 %v2029, 8
      %v2038 = vadd.s32 %v2029, 9
      %vm2039 = vcmp.ge.s32.totalorder %v2029, 0
      %vm2040 = vcmp.ge.s32.totalorder %v2030, 0
      %vm2041 = vcmp.ge.s32.totalorder %v2031, 0
      %vm2042 = vcmp.ge.s32.totalorder %v2032, 0
      %vm2043 = vcmp.ge.s32.totalorder %v2033, 0
      %vm2044 = vcmp.ge.s32.totalorder %v2034, 0
      %vm2045 = vcmp.ge.s32.totalorder %v2035, 0
      %vm2046 = vcmp.ge.s32.totalorder %v2036, 0
      %vm2047 = vcmp.ge.s32.totalorder %v2037, 0
      %vm2048 = vcmp.ge.s32.totalorder %v2038, 0
      %vm2049 = vcmp.lt.s32.totalorder %v2029, 16
      %vm2050 = vcmp.lt.s32.totalorder %v2030, 16
      %vm2051 = vcmp.lt.s32.totalorder %v2031, 16
      %vm2052 = vcmp.lt.s32.totalorder %v2032, 16
      %vm2053 = vcmp.lt.s32.totalorder %v2033, 16
      %vm2054 = vcmp.lt.s32.totalorder %v2034, 16
      %vm2055 = vcmp.lt.s32.totalorder %v2035, 16
      %vm2056 = vcmp.lt.s32.totalorder %v2036, 16
      %vm2057 = vcmp.lt.s32.totalorder %v2037, 16
      %vm2058 = vcmp.lt.s32.totalorder %v2038, 16
      %vm2059 = vmand %vm2039, %vm2049
      %vm2060 = vmand %vm2040, %vm2050
      %vm2061 = vmand %vm2041, %vm2051
      %vm2062 = vmand %vm2042, %vm2052
      %vm2063 = vmand %vm2043, %vm2053
      %vm2064 = vmand %vm2044, %vm2054
      %vm2065 = vmand %vm2045, %vm2055
      %vm2066 = vmand %vm2046, %vm2056
      %vm2067 = vmand %vm2047, %vm2057
      %vm2068 = vmand %vm2048, %vm2058
      %v2069 = vsel %vm2059, %v2008, 0.0
      %v2070 = vsel %vm2059, %v2009, 0.0
      %v2071 = vsel %vm2060, %v2010, 0.0
      %v2072 = vsel %vm2060, %v2011, 0.0
      %v2073 = vsel %vm2061, %v2012, 0.0
      %v2074 = vsel %vm2061, %v2013, 0.0
      %v2075 = vsel %vm2062, %v2014, 0.0
      %v2076 = vsel %vm2062, %v2015, 0.0
      %v2077 = vsel %vm2063, %v2016, 0.0
      %v2078 = vsel %vm2063, %v2017, 0.0
      %v2079 = vsel %vm2064, %v2018, 0.0
      %v2080 = vsel %vm2064, %v2019, 0.0
      %v2081 = vsel %vm2065, %v2020, 0.0
      %v2082 = vsel %vm2065, %v2021, 0.0
      %v2083 = vsel %vm2066, %v2022, 0.0
      %v2084 = vsel %vm2066, %v2023, 0.0
      %v2085 = vsel %vm2067, %v2024, 0.0
      %v2086 = vsel %vm2067, %v2025, 0.0
      %v2087 = vsel %vm2068, %v2026, 0.0
      %v2088 = vsel %vm2068, %v2027, 0.0
      %v2089 = vpack.c.bf16 %v2069, %v2069
      %v2090 = vpack.c.bf16 %v2070, %v2070
      %v2091 = vpack.c.bf16 %v2071, %v2071
      %v2092 = vpack.c.bf16 %v2072, %v2072
      %v2093 = vpack.c.bf16 %v2073, %v2073
      %v2094 = vpack.c.bf16 %v2074, %v2074
      %v2095 = vpack.c.bf16 %v2075, %v2075
      %v2096 = vpack.c.bf16 %v2076, %v2076
      %v2097 = vpack.c.bf16 %v2077, %v2077
      %v2098 = vpack.c.bf16 %v2078, %v2078
      %v2099 = vpack.c.bf16 %v2079, %v2079
      %v2100 = vpack.c.bf16 %v2080, %v2080
      %v2101 = vpack.c.bf16 %v2081, %v2081
      %v2102 = vpack.c.bf16 %v2082, %v2082
      %v2103 = vpack.c.bf16 %v2083, %v2083
      %v2104 = vpack.c.bf16 %v2084, %v2084
      %v2105 = vpack.c.bf16 %v2085, %v2085
      %v2106 = vpack.c.bf16 %v2086, %v2086
      %v2107 = vpack.c.bf16 %v2087, %v2087
      %v2108 = vpack.c.bf16 %v2088, %v2088
      %v2129 = vunpack.c.l.b16 %v2089
      %v2130 = vunpack.c.l.b16 %v2090
      %v2131 = vunpack.c.l.b16 %v2091
      %v2132 = vunpack.c.l.b16 %v2092
      %v2133 = vunpack.c.l.b16 %v2093
      %v2134 = vunpack.c.l.b16 %v2094
      %v2135 = vunpack.c.l.b16 %v2095
      %v2136 = vunpack.c.l.b16 %v2096
      %v2137 = vunpack.c.l.b16 %v2097
      %v2138 = vunpack.c.l.b16 %v2098
      %v2139 = vunpack.c.l.b16 %v2099
      %v2140 = vunpack.c.l.b16 %v2100
      %v2141 = vunpack.c.l.b16 %v2101
      %v2142 = vunpack.c.l.b16 %v2102
      %v2143 = vunpack.c.l.b16 %v2103
      %v2144 = vunpack.c.l.b16 %v2104
      %v2145 = vunpack.c.l.b16 %v2105
      %v2146 = vunpack.c.l.b16 %v2106
      %v2147 = vunpack.c.l.b16 %v2107
      %v2148 = vunpack.c.l.b16 %v2108
      %v2149 = vpack.c.b16 %v2130, %v2129
      %v2150 = vpack.c.b16 %v2132, %v2131
      %v2151 = vpack.c.b16 %v2134, %v2133
      %v2152 = vpack.c.b16 %v2136, %v2135
      %v2153 = vpack.c.b16 %v2138, %v2137
      %v2154 = vpack.c.b16 %v2140, %v2139
      %v2155 = vpack.c.b16 %v2142, %v2141
      %v2156 = vpack.c.b16 %v2144, %v2143
      %v2157 = vpack.c.b16 %v2146, %v2145
      %v2158 = vpack.c.b16 %v2148, %v2147
      %v2160 = vshrl.u32 %v2149, 16
      %v2162 = vrot.slane %v2160, 7
      %v2163 = vshll.u32 %v2149, 16
      %v2165 = vor.u32 %v2162, %v2163
      %v2167 = vshrl.u32 %v2150, 16
      %v2169 = vrot.slane %v2167, 7
      %v2170 = vshll.u32 %v2150, 16
      %v2172 = vor.u32 %v2169, %v2170
      %v2174 = vshrl.u32 %v2151, 16
      %v2176 = vrot.slane %v2174, 7
      %v2177 = vshll.u32 %v2151, 16
      %v2179 = vor.u32 %v2176, %v2177
      %v2181 = vshrl.u32 %v2152, 16
      %v2183 = vrot.slane %v2181, 7
      %v2184 = vshll.u32 %v2152, 16
      %v2186 = vor.u32 %v2183, %v2184
      %v2188 = vshrl.u32 %v2153, 16
      %v2190 = vrot.slane %v2188, 7
      %v2191 = vshll.u32 %v2153, 16
      %v2193 = vor.u32 %v2190, %v2191
      %v2195 = vshrl.u32 %v2154, 16
      %v2197 = vrot.slane %v2195, 7
      %v2198 = vshll.u32 %v2154, 16
      %v2200 = vor.u32 %v2197, %v2198
      %v2202 = vshrl.u32 %v2155, 16
      %v2204 = vrot.slane %v2202, 7
      %v2205 = vshll.u32 %v2155, 16
      %v2207 = vor.u32 %v2204, %v2205
      %v2209 = vshrl.u32 %v2156, 16
      %v2211 = vrot.slane %v2209, 7
      %v2212 = vshll.u32 %v2156, 16
      %v2214 = vor.u32 %v2211, %v2212
      %v2216 = vshrl.u32 %v2157, 16
      %v2218 = vrot.slane %v2216, 7
      %v2219 = vshll.u32 %v2157, 16
      %v2221 = vor.u32 %v2218, %v2219
      %v2223 = vshrl.u32 %v2158, 16
      %v2225 = vrot.slane %v2223, 7
      %v2226 = vshll.u32 %v2158, 16
      %v2228 = vor.u32 %v2225, %v2226
      %vm2249 = vcmask 1040384
      %vm2250 = vsmask.f32 256
      %vm2251 = vmand %vm2249, %vm2250
      %v2252 = vsel %vm2251, 0, %v2165
      %v2253 = vsel %vm2251, 0, %v2172
      %v2254 = vsel %vm2251, 0, %v2179
      %v2255 = vsel %vm2251, 0, %v2186
      %v2256 = vsel %vm2251, 0, %v2193
      %v2257 = vsel %vm2251, 0, %v2200
      %v2258 = vsel %vm2251, 0, %v2207
      %v2259 = vsel %vm2251, 0, %v2214
      %v2260 = vsel %vm2251, 0, %v2221
      %v2261 = vsel %vm2251, 0, %v2228
      %v2262 = vsel %vm2251, %v2162, 0
      %v2263 = vsel %vm2251, %v2169, 0
      %v2264 = vsel %vm2251, %v2176, 0
      %v2265 = vsel %vm2251, %v2183, 0
      %v2266 = vsel %vm2251, %v2190, 0
      %v2267 = vsel %vm2251, %v2197, 0
      %v2268 = vsel %vm2251, %v2204, 0
      %v2269 = vsel %vm2251, %v2211, 0
      %v2270 = vsel %vm2251, %v2218, 0
      %v2271 = vsel %vm2251, %v2225, 0
      %vm2272 = vsmask.f32 7424
      %v2274 = vshrl.u32 %v2252, 16
      %v2276 = vshll.u32 %v2252, 16
      %v2278 = vrot.slane %v2276, 1
      %v2279 = vor.u32 %v2274, %v2278
      %v2281 = vshll.u32 %v2262, 16
      %v2283 = vrot.slane %v2281, 1
      %v2284 = vsel %vm2272, %v2279, %v2283
      %v2286 = vshrl.u32 %v2253, 16
      %v2288 = vshll.u32 %v2253, 16
      %v2290 = vrot.slane %v2288, 1
      %v2291 = vor.u32 %v2286, %v2290
      %v2293 = vshll.u32 %v2263, 16
      %v2295 = vrot.slane %v2293, 1
      %v2296 = vsel %vm2272, %v2291, %v2295
      %v2298 = vshrl.u32 %v2254, 16
      %v2300 = vshll.u32 %v2254, 16
      %v2302 = vrot.slane %v2300, 1
      %v2303 = vor.u32 %v2298, %v2302
      %v2305 = vshll.u32 %v2264, 16
      %v2307 = vrot.slane %v2305, 1
      %v2308 = vsel %vm2272, %v2303, %v2307
      %v2310 = vshrl.u32 %v2255, 16
      %v2312 = vshll.u32 %v2255, 16
      %v2314 = vrot.slane %v2312, 1
      %v2315 = vor.u32 %v2310, %v2314
      %v2317 = vshll.u32 %v2265, 16
      %v2319 = vrot.slane %v2317, 1
      %v2320 = vsel %vm2272, %v2315, %v2319
      %v2322 = vshrl.u32 %v2256, 16
      %v2324 = vshll.u32 %v2256, 16
      %v2326 = vrot.slane %v2324, 1
      %v2327 = vor.u32 %v2322, %v2326
      %v2329 = vshll.u32 %v2266, 16
      %v2331 = vrot.slane %v2329, 1
      %v2332 = vsel %vm2272, %v2327, %v2331
      %v2334 = vshrl.u32 %v2257, 16
      %v2336 = vshll.u32 %v2257, 16
      %v2338 = vrot.slane %v2336, 1
      %v2339 = vor.u32 %v2334, %v2338
      %v2341 = vshll.u32 %v2267, 16
      %v2343 = vrot.slane %v2341, 1
      %v2344 = vsel %vm2272, %v2339, %v2343
      %v2346 = vshrl.u32 %v2258, 16
      %v2348 = vshll.u32 %v2258, 16
      %v2350 = vrot.slane %v2348, 1
      %v2351 = vor.u32 %v2346, %v2350
      %v2353 = vshll.u32 %v2268, 16
      %v2355 = vrot.slane %v2353, 1
      %v2356 = vsel %vm2272, %v2351, %v2355
      %v2358 = vshrl.u32 %v2259, 16
      %v2360 = vshll.u32 %v2259, 16
      %v2362 = vrot.slane %v2360, 1
      %v2363 = vor.u32 %v2358, %v2362
      %v2365 = vshll.u32 %v2269, 16
      %v2367 = vrot.slane %v2365, 1
      %v2368 = vsel %vm2272, %v2363, %v2367
      %vm2393 = vcmask 1046528
      %v2394 = vrot.slane %v2252, 1
      %v2395 = vrot.slane %v2262, 1
      %v2396 = vsel %vm2393, %v2394, %v2395
      %v2397 = vrot.slane %v2253, 1
      %v2398 = vrot.slane %v2263, 1
      %v2399 = vsel %vm2393, %v2397, %v2398
      %v2400 = vrot.slane %v2254, 1
      %v2401 = vrot.slane %v2264, 1
      %v2402 = vsel %vm2393, %v2400, %v2401
      %v2403 = vrot.slane %v2255, 1
      %v2404 = vrot.slane %v2265, 1
      %v2405 = vsel %vm2393, %v2403, %v2404
      %v2406 = vrot.slane %v2256, 1
      %v2407 = vrot.slane %v2266, 1
      %v2408 = vsel %vm2393, %v2406, %v2407
      %v2409 = vrot.slane %v2257, 1
      %v2410 = vrot.slane %v2267, 1
      %v2411 = vsel %vm2393, %v2409, %v2410
      %v2412 = vrot.slane %v2258, 1
      %v2413 = vrot.slane %v2268, 1
      %v2414 = vsel %vm2393, %v2412, %v2413
      %v2415 = vrot.slane %v2259, 1
      %v2416 = vrot.slane %v2269, 1
      %v2417 = vsel %vm2393, %v2415, %v2416
      %v2427 = vshrl.u32 %v2260, 16
      %v2429 = vshll.u32 %v2260, 16
      %v2431 = vrot.slane %v2429, 1
      %v2432 = vor.u32 %v2427, %v2431
      %v2434 = vshll.u32 %v2270, 16
      %v2436 = vrot.slane %v2434, 1
      %v2437 = vsel %vm2272, %v2432, %v2436
      %v2441 = vrot.slane %v2260, 1
      %v2442 = vrot.slane %v2270, 1
      %v2443 = vsel %vm2393, %v2441, %v2442
      %v2446 = vshrl.u32 %v2261, 16
      %v2448 = vshll.u32 %v2261, 16
      %v2450 = vrot.slane %v2448, 1
      %v2451 = vor.u32 %v2446, %v2450
      %v2453 = vshll.u32 %v2271, 16
      %v2455 = vrot.slane %v2453, 1
      %v2456 = vsel %vm2272, %v2451, %v2455
      %v2460 = vrot.slane %v2261, 1
      %v2461 = vrot.slane %v2271, 1
      %v2462 = vsel %vm2393, %v2460, %v2461
      %v2464 = vld [vmem:[%s2] sm:$0xf]
      %v2465 = vld [vmem:[%s2 + $0x4] sm:$0xf]
      %v2466 = vld [vmem:[%s2 + $0x8] sm:$0xf]
      %v2467 = vld [vmem:[%s2 + $0xc] sm:$0xf]
      %v2468 = vld [vmem:[%s2 + $0x10] sm:$0xf]
      %v2469 = vld [vmem:[%s2 + $0x14] sm:$0xf]
      %v2470 = vld [vmem:[%s2 + $0x18] sm:$0xf]
      %v2471 = vld [vmem:[%s2 + $0x1c] sm:$0xf]
      %v2472 = vld [vmem:[%s2 + $0x20] sm:$0xf]
      %v2473 = vld [vmem:[%s2 + $0x24] sm:$0xf]
      %v2474 = vld [vmem:[%s2 + $0x28] sm:$0xf]
      %v2475 = vld [vmem:[%s2 + $0x2c] sm:$0xf]
      %v2476 = vld [vmem:[%s2 + $0x30] sm:$0xf]
      %v2477 = vld [vmem:[%s2 + $0x34] sm:$0xf]
      %v2478 = vld [vmem:[%s2 + $0x38] sm:$0xf]
      %v2479 = vld [vmem:[%s2 + $0x3c] sm:$0xf]
      %v2480 = vld [vmem:[%s2 + $0x40] sm:$0xf]
      %v2481 = vld [vmem:[%s2 + $0x44] sm:$0xf]
      %v2482 = vld [vmem:[%s2 + $0x48] sm:$0xf]
      %v2483 = vld [vmem:[%s2 + $0x4c] sm:$0xf]
      %v2484 = vld [vmem:[%s2 + $0x50] sm:$0xf]
      %v2485 = vld [vmem:[%s2 + $0x54] sm:$0xf]
      %v2486 = vld [vmem:[%s2 + $0x58] sm:$0xf]
      %v2487 = vld [vmem:[%s2 + $0x5c] sm:$0xf]
      %v2488 = vld [vmem:[%s2 + $0x60] sm:$0xf]
      %v2489 = vld [vmem:[%s2 + $0x64] sm:$0xf]
      %v2490 = vld [vmem:[%s2 + $0x68] sm:$0xf]
      %v2491 = vld [vmem:[%s2 + $0x6c] sm:$0xf]
      %v2492 = vld [vmem:[%s2 + $0x70] sm:$0xf]
      %v2493 = vld [vmem:[%s2 + $0x74] sm:$0xf]
      %v2494 = vld [vmem:[%s2 + $0x78] sm:$0xf]
      %v2495 = vld [vmem:[%s2 + $0x7c] sm:$0xf]
      %v2496 = vld [vmem:[%s2 + $0x80] sm:$0xf]
      %v2497 = vld [vmem:[%s2 + $0x84] sm:$0xf]
      %v2498 = vld [vmem:[%s2 + $0x88] sm:$0xf]
      %v2499 = vld [vmem:[%s2 + $0x8c] sm:$0xf]
      %v2500 = vld [vmem:[%s2 + $0x90] sm:$0xf]
      %v2501 = vld [vmem:[%s2 + $0x94] sm:$0xf]
      %v2502 = vld [vmem:[%s2 + $0x98] sm:$0xf]
      %v2503 = vld [vmem:[%s2 + $0x9c] sm:$0xf]
      %v2504 = vld [vmem:[%s2 + $0xa0] sm:$0xf]
      %v2505 = vld [vmem:[%s2 + $0xa4] sm:$0xf]
      %v2506 = vld [vmem:[%s2 + $0xa8] sm:$0xf]
      %v2507 = vld [vmem:[%s2 + $0xac] sm:$0xf]
      %v2508 = vld [vmem:[%s2 + $0xb0] sm:$0xf]
      %v2509 = vld [vmem:[%s2 + $0xb4] sm:$0xf]
      %v2510 = vld [vmem:[%s2 + $0xb8] sm:$0xf]
      %v2511 = vld [vmem:[%s2 + $0xbc] sm:$0xf]
      %v2512 = vld [vmem:[%s2 + $0xc0] sm:$0xf]
      %v2513 = vld [vmem:[%s2 + $0xc4] sm:$0xf]
      %v2514 = vld [vmem:[%s2 + $0xc8] sm:$0xf]
      %v2515 = vld [vmem:[%s2 + $0xcc] sm:$0xf]
      %v2516 = vld [vmem:[%s2 + $0xd0] sm:$0xf]
      %v2517 = vld [vmem:[%s2 + $0xd4] sm:$0xf]
      %v2518 = vld [vmem:[%s2 + $0xd8] sm:$0xf]
      %v2519 = vld [vmem:[%s2 + $0xdc] sm:$0xf]
      %v2520 = vld [vmem:[%s2 + $0xe0] sm:$0xf]
      %v2521 = vld [vmem:[%s2 + $0xe4] sm:$0xf]
      %v2522 = vld [vmem:[%s2 + $0xe8] sm:$0xf]
      %v2523 = vld [vmem:[%s2 + $0xec] sm:$0xf]
      %v2524 = vld [vmem:[%s2 + $0xf0] sm:$0xf]
      %v2525 = vld [vmem:[%s2 + $0xf4] sm:$0xf]
      %v2526 = vld [vmem:[%s2 + $0xf8] sm:$0xf]
      %v2527 = vld [vmem:[%s2 + $0xfc] sm:$0xf]
      %v2528 = vld [vmem:[%s2 + $0x100] sm:$0xf]
      %v2529 = vld [vmem:[%s2 + $0x104] sm:$0xf]
      %v2530 = vld [vmem:[%s2 + $0x108] sm:$0xf]
      %v2531 = vld [vmem:[%s2 + $0x10c] sm:$0xf]
      %v2532 = vld [vmem:[%s2 + $0x110] sm:$0xf]
      %v2533 = vld [vmem:[%s2 + $0x114] sm:$0xf]
      %v2534 = vld [vmem:[%s2 + $0x118] sm:$0xf]
      %v2535 = vld [vmem:[%s2 + $0x11c] sm:$0xf]
      %v2536 = vld [vmem:[%s2 + $0x120] sm:$0xf]
      %v2537 = vld [vmem:[%s2 + $0x124] sm:$0xf]
      %v2538 = vld [vmem:[%s2 + $0x128] sm:$0xf]
      %v2539 = vld [vmem:[%s2 + $0x12c] sm:$0xf]
      %v2540 = vld [vmem:[%s2 + $0x130] sm:$0xf]
      %v2541 = vld [vmem:[%s2 + $0x134] sm:$0xf]
      %v2542 = vld [vmem:[%s2 + $0x138] sm:$0xf]
      %v2543 = vld [vmem:[%s2 + $0x13c] sm:$0xf]
      %v2544 = vld [vmem:[%s2 + $0x140] sm:$0xf]
      %v2545 = vld [vmem:[%s2 + $0x144] sm:$0xf]
      %v2546 = vld [vmem:[%s2 + $0x148] sm:$0xf]
      %v2547 = vld [vmem:[%s2 + $0x14c] sm:$0xf]
      %v2548 = vld [vmem:[%s2 + $0x150] sm:$0xf]
      %v2549 = vld [vmem:[%s2 + $0x154] sm:$0xf]
      %v2550 = vld [vmem:[%s2 + $0x158] sm:$0xf]
      %v2551 = vld [vmem:[%s2 + $0x15c] sm:$0xf]
      %v2552 = vld [vmem:[%s2 + $0x160] sm:$0xf]
      %v2553 = vld [vmem:[%s2 + $0x164] sm:$0xf]
      %v2554 = vld [vmem:[%s2 + $0x168] sm:$0xf]
      %v2555 = vld [vmem:[%s2 + $0x16c] sm:$0xf]
      %v2556 = vld [vmem:[%s2 + $0x170] sm:$0xf]
      %v2557 = vld [vmem:[%s2 + $0x174] sm:$0xf]
      %v2558 = vld [vmem:[%s2 + $0x178] sm:$0xf]
      %v2559 = vld [vmem:[%s2 + $0x17c] sm:$0xf]
      %v2560 = vld [vmem:[%s2 + $0x180] sm:$0xf]
      %v2561 = vld [vmem:[%s2 + $0x184] sm:$0xf]
      %v2562 = vld [vmem:[%s2 + $0x188] sm:$0xf]
      %v2563 = vld [vmem:[%s2 + $0x18c] sm:$0xf]
      %v2564 = vld [vmem:[%s2 + $0x190] sm:$0xf]
      %v2565 = vld [vmem:[%s2 + $0x194] sm:$0xf]
      %v2566 = vld [vmem:[%s2 + $0x198] sm:$0xf]
      %v2567 = vld [vmem:[%s2 + $0x19c] sm:$0xf]
      %v2568 = vld [vmem:[%s2 + $0x1a0] sm:$0xf]
      %v2569 = vld [vmem:[%s2 + $0x1a4] sm:$0xf]
      %v2570 = vld [vmem:[%s2 + $0x1a8] sm:$0xf]
      %v2571 = vld [vmem:[%s2 + $0x1ac] sm:$0xf]
      %v2572 = vld [vmem:[%s2 + $0x1b0] sm:$0xf]
      %v2573 = vld [vmem:[%s2 + $0x1b4] sm:$0xf]
      %v2574 = vld [vmem:[%s2 + $0x1b8] sm:$0xf]
      %v2575 = vld [vmem:[%s2 + $0x1bc] sm:$0xf]
      %v2576 = vld [vmem:[%s2 + $0x1c0] sm:$0xf]
      %v2577 = vld [vmem:[%s2 + $0x1c4] sm:$0xf]
      %v2578 = vld [vmem:[%s2 + $0x1c8] sm:$0xf]
      %v2579 = vld [vmem:[%s2 + $0x1cc] sm:$0xf]
      %v2580 = vld [vmem:[%s2 + $0x1d0] sm:$0xf]
      %v2581 = vld [vmem:[%s2 + $0x1d4] sm:$0xf]
      %v2582 = vld [vmem:[%s2 + $0x1d8] sm:$0xf]
      %v2583 = vld [vmem:[%s2 + $0x1dc] sm:$0xf]
      %v2584 = vld [vmem:[%s2 + $0x1e0] sm:$0xf]
      %v2585 = vld [vmem:[%s2 + $0x1e4] sm:$0xf]
      %v2586 = vld [vmem:[%s2 + $0x1e8] sm:$0xf]
      %v2587 = vld [vmem:[%s2 + $0x1ec] sm:$0xf]
      %v2588 = vld [vmem:[%s2 + $0x1f0] sm:$0xf]
      %v2589 = vld [vmem:[%s2 + $0x1f4] sm:$0xf]
      %v2590 = vld [vmem:[%s2 + $0x1f8] sm:$0xf]
      %v2591 = vld [vmem:[%s2 + $0x1fc] sm:$0xf]
      %v2592 = vld [vmem:[%s2 + $0x200] sm:$0xf]
      %v2593 = vld [vmem:[%s2 + $0x204] sm:$0xf]
      %v2594 = vld [vmem:[%s2 + $0x208] sm:$0xf]
      %v2595 = vld [vmem:[%s2 + $0x20c] sm:$0xf]
      %v2596 = vld [vmem:[%s2 + $0x210] sm:$0xf]
      %v2597 = vld [vmem:[%s2 + $0x214] sm:$0xf]
      %v2598 = vld [vmem:[%s2 + $0x218] sm:$0xf]
      %v2599 = vld [vmem:[%s2 + $0x21c] sm:$0xf]
      %v2600 = vld [vmem:[%s2 + $0x220] sm:$0xf]
      %v2601 = vld [vmem:[%s2 + $0x224] sm:$0xf]
      %v2602 = vld [vmem:[%s2 + $0x228] sm:$0xf]
      %v2603 = vld [vmem:[%s2 + $0x22c] sm:$0xf]
      %v2604 = vld [vmem:[%s2 + $0x230] sm:$0xf]
      %v2605 = vld [vmem:[%s2 + $0x234] sm:$0xf]
      %v2606 = vld [vmem:[%s2 + $0x238] sm:$0xf]
      %v2607 = vld [vmem:[%s2 + $0x23c] sm:$0xf]
      %v2752 = vunpack.c.l.b16 %v2464
      %v2753 = vunpack.c.l.b16 %v2465
      %v2754 = vunpack.c.l.b16 %v2466
      %v2755 = vunpack.c.l.b16 %v2467
      %v2756 = vunpack.c.l.b16 %v2468
      %v2757 = vunpack.c.l.b16 %v2469
      %v2758 = vunpack.c.l.b16 %v2470
      %v2759 = vunpack.c.l.b16 %v2471
      %v2760 = vunpack.c.l.b16 %v2472
      %v2761 = vunpack.c.l.b16 %v2473
      %v2762 = vunpack.c.l.b16 %v2474
      %v2763 = vunpack.c.l.b16 %v2475
      %v2764 = vunpack.c.l.b16 %v2476
      %v2765 = vunpack.c.l.b16 %v2477
      %v2766 = vunpack.c.l.b16 %v2478
      %v2767 = vunpack.c.l.b16 %v2479
      %v2768 = vunpack.c.l.b16 %v2480
      %v2769 = vunpack.c.l.b16 %v2481
      %v2770 = vunpack.c.l.b16 %v2482
      %v2771 = vunpack.c.l.b16 %v2483
      %v2772 = vunpack.c.l.b16 %v2484
      %v2773 = vunpack.c.l.b16 %v2485
      %v2774 = vunpack.c.l.b16 %v2486
      %v2775 = vunpack.c.l.b16 %v2487
      %v2776 = vunpack.c.l.b16 %v2488
      %v2777 = vunpack.c.l.b16 %v2489
      %v2778 = vunpack.c.l.b16 %v2490
      %v2779 = vunpack.c.l.b16 %v2491
      %v2780 = vunpack.c.l.b16 %v2492
      %v2781 = vunpack.c.l.b16 %v2493
      %v2782 = vunpack.c.l.b16 %v2494
      %v2783 = vunpack.c.l.b16 %v2495
      %v2784 = vunpack.c.l.b16 %v2496
      %v2785 = vunpack.c.l.b16 %v2497
      %v2786 = vunpack.c.l.b16 %v2498
      %v2787 = vunpack.c.l.b16 %v2499
      %v2788 = vunpack.c.l.b16 %v2500
      %v2789 = vunpack.c.l.b16 %v2501
      %v2790 = vunpack.c.l.b16 %v2502
      %v2791 = vunpack.c.l.b16 %v2503
      %v2792 = vunpack.c.l.b16 %v2504
      %v2793 = vunpack.c.l.b16 %v2505
      %v2794 = vunpack.c.l.b16 %v2506
      %v2795 = vunpack.c.l.b16 %v2507
      %v2796 = vunpack.c.l.b16 %v2508
      %v2797 = vunpack.c.l.b16 %v2509
      %v2798 = vunpack.c.l.b16 %v2510
      %v2799 = vunpack.c.l.b16 %v2511
      %v2800 = vunpack.c.l.b16 %v2512
      %v2801 = vunpack.c.l.b16 %v2513
      %v2802 = vunpack.c.l.b16 %v2514
      %v2803 = vunpack.c.l.b16 %v2515
      %v2804 = vunpack.c.l.b16 %v2516
      %v2805 = vunpack.c.l.b16 %v2517
      %v2806 = vunpack.c.l.b16 %v2518
      %v2807 = vunpack.c.l.b16 %v2519
      %v2808 = vunpack.c.l.b16 %v2520
      %v2809 = vunpack.c.l.b16 %v2521
      %v2810 = vunpack.c.l.b16 %v2522
      %v2811 = vunpack.c.l.b16 %v2523
      %v2812 = vunpack.c.l.b16 %v2524
      %v2813 = vunpack.c.l.b16 %v2525
      %v2814 = vunpack.c.l.b16 %v2526
      %v2815 = vunpack.c.l.b16 %v2527
      %v2816 = vunpack.c.l.b16 %v2528
      %v2817 = vunpack.c.l.b16 %v2529
      %v2818 = vunpack.c.l.b16 %v2530
      %v2819 = vunpack.c.l.b16 %v2531
      %v2820 = vunpack.c.l.b16 %v2532
      %v2821 = vunpack.c.l.b16 %v2533
      %v2822 = vunpack.c.l.b16 %v2534
      %v2823 = vunpack.c.l.b16 %v2535
      %v2824 = vunpack.c.l.b16 %v2536
      %v2825 = vunpack.c.l.b16 %v2537
      %v2826 = vunpack.c.l.b16 %v2538
      %v2827 = vunpack.c.l.b16 %v2539
      %v2828 = vunpack.c.l.b16 %v2540
      %v2829 = vunpack.c.l.b16 %v2541
      %v2830 = vunpack.c.l.b16 %v2542
      %v2831 = vunpack.c.l.b16 %v2543
      %v2832 = vunpack.c.l.b16 %v2544
      %v2833 = vunpack.c.l.b16 %v2545
      %v2834 = vunpack.c.l.b16 %v2546
      %v2835 = vunpack.c.l.b16 %v2547
      %v2836 = vunpack.c.l.b16 %v2548
      %v2837 = vunpack.c.l.b16 %v2549
      %v2838 = vunpack.c.l.b16 %v2550
      %v2839 = vunpack.c.l.b16 %v2551
      %v2840 = vunpack.c.l.b16 %v2552
      %v2841 = vunpack.c.l.b16 %v2553
      %v2842 = vunpack.c.l.b16 %v2554
      %v2843 = vunpack.c.l.b16 %v2555
      %v2844 = vunpack.c.l.b16 %v2556
      %v2845 = vunpack.c.l.b16 %v2557
      %v2846 = vunpack.c.l.b16 %v2558
      %v2847 = vunpack.c.l.b16 %v2559
      %v2848 = vunpack.c.l.b16 %v2560
      %v2849 = vunpack.c.l.b16 %v2561
      %v2850 = vunpack.c.l.b16 %v2562
      %v2851 = vunpack.c.l.b16 %v2563
      %v2852 = vunpack.c.l.b16 %v2564
      %v2853 = vunpack.c.l.b16 %v2565
      %v2854 = vunpack.c.l.b16 %v2566
      %v2855 = vunpack.c.l.b16 %v2567
      %v2856 = vunpack.c.l.b16 %v2568
      %v2857 = vunpack.c.l.b16 %v2569
      %v2858 = vunpack.c.l.b16 %v2570
      %v2859 = vunpack.c.l.b16 %v2571
      %v2860 = vunpack.c.l.b16 %v2572
      %v2861 = vunpack.c.l.b16 %v2573
      %v2862 = vunpack.c.l.b16 %v2574
      %v2863 = vunpack.c.l.b16 %v2575
      %v2864 = vunpack.c.l.b16 %v2576
      %v2865 = vunpack.c.l.b16 %v2577
      %v2866 = vunpack.c.l.b16 %v2578
      %v2867 = vunpack.c.l.b16 %v2579
      %v2868 = vunpack.c.l.b16 %v2580
      %v2869 = vunpack.c.l.b16 %v2581
      %v2870 = vunpack.c.l.b16 %v2582
      %v2871 = vunpack.c.l.b16 %v2583
      %v2872 = vunpack.c.l.b16 %v2584
      %v2873 = vunpack.c.l.b16 %v2585
      %v2874 = vunpack.c.l.b16 %v2586
      %v2875 = vunpack.c.l.b16 %v2587
      %v2876 = vunpack.c.l.b16 %v2588
      %v2877 = vunpack.c.l.b16 %v2589
      %v2878 = vunpack.c.l.b16 %v2590
      %v2879 = vunpack.c.l.b16 %v2591
      %v2880 = vunpack.c.l.b16 %v2592
      %v2881 = vunpack.c.l.b16 %v2593
      %v2882 = vunpack.c.l.b16 %v2594
      %v2883 = vunpack.c.l.b16 %v2595
      %v2884 = vunpack.c.l.b16 %v2596
      %v2885 = vunpack.c.l.b16 %v2597
      %v2886 = vunpack.c.l.b16 %v2598
      %v2887 = vunpack.c.l.b16 %v2599
      %v2888 = vunpack.c.l.b16 %v2600
      %v2889 = vunpack.c.l.b16 %v2601
      %v2890 = vunpack.c.l.b16 %v2602
      %v2891 = vunpack.c.l.b16 %v2603
      %v2892 = vunpack.c.l.b16 %v2604
      %v2893 = vunpack.c.l.b16 %v2605
      %v2894 = vunpack.c.l.b16 %v2606
      %v2895 = vunpack.c.l.b16 %v2607
      %v2896 = vpack.c.b16 %v2753, %v2752
      %v2897 = vpack.c.b16 %v2755, %v2754
      %v2898 = vpack.c.b16 %v2757, %v2756
      %v2899 = vpack.c.b16 %v2759, %v2758
      %v2900 = vpack.c.b16 %v2761, %v2760
      %v2901 = vpack.c.b16 %v2763, %v2762
      %v2902 = vpack.c.b16 %v2765, %v2764
      %v2903 = vpack.c.b16 %v2767, %v2766
      %v2904 = vpack.c.b16 %v2769, %v2768
      %v2905 = vpack.c.b16 %v2771, %v2770
      %v2906 = vpack.c.b16 %v2773, %v2772
      %v2907 = vpack.c.b16 %v2775, %v2774
      %v2908 = vpack.c.b16 %v2777, %v2776
      %v2909 = vpack.c.b16 %v2779, %v2778
      %v2910 = vpack.c.b16 %v2781, %v2780
      %v2911 = vpack.c.b16 %v2783, %v2782
      %v2912 = vpack.c.b16 %v2785, %v2784
      %v2913 = vpack.c.b16 %v2787, %v2786
      %v2914 = vpack.c.b16 %v2789, %v2788
      %v2915 = vpack.c.b16 %v2791, %v2790
      %v2916 = vpack.c.b16 %v2793, %v2792
      %v2917 = vpack.c.b16 %v2795, %v2794
      %v2918 = vpack.c.b16 %v2797, %v2796
      %v2919 = vpack.c.b16 %v2799, %v2798
      %v2920 = vpack.c.b16 %v2801, %v2800
      %v2921 = vpack.c.b16 %v2803, %v2802
      %v2922 = vpack.c.b16 %v2805, %v2804
      %v2923 = vpack.c.b16 %v2807, %v2806
      %v2924 = vpack.c.b16 %v2809, %v2808
      %v2925 = vpack.c.b16 %v2811, %v2810
      %v2926 = vpack.c.b16 %v2813, %v2812
      %v2927 = vpack.c.b16 %v2815, %v2814
      %v2928 = vpack.c.b16 %v2817, %v2816
      %v2929 = vpack.c.b16 %v2819, %v2818
      %v2930 = vpack.c.b16 %v2821, %v2820
      %v2931 = vpack.c.b16 %v2823, %v2822
      %v2932 = vpack.c.b16 %v2825, %v2824
      %v2933 = vpack.c.b16 %v2827, %v2826
      %v2934 = vpack.c.b16 %v2829, %v2828
      %v2935 = vpack.c.b16 %v2831, %v2830
      %v2936 = vpack.c.b16 %v2833, %v2832
      %v2937 = vpack.c.b16 %v2835, %v2834
      %v2938 = vpack.c.b16 %v2837, %v2836
      %v2939 = vpack.c.b16 %v2839, %v2838
      %v2940 = vpack.c.b16 %v2841, %v2840
      %v2941 = vpack.c.b16 %v2843, %v2842
      %v2942 = vpack.c.b16 %v2845, %v2844
      %v2943 = vpack.c.b16 %v2847, %v2846
      %v2944 = vpack.c.b16 %v2849, %v2848
      %v2945 = vpack.c.b16 %v2851, %v2850
      %v2946 = vpack.c.b16 %v2853, %v2852
      %v2947 = vpack.c.b16 %v2855, %v2854
      %v2948 = vpack.c.b16 %v2857, %v2856
      %v2949 = vpack.c.b16 %v2859, %v2858
      %v2950 = vpack.c.b16 %v2861, %v2860
      %v2951 = vpack.c.b16 %v2863, %v2862
      %v2952 = vpack.c.b16 %v2865, %v2864
      %v2953 = vpack.c.b16 %v2867, %v2866
      %v2954 = vpack.c.b16 %v2869, %v2868
      %v2955 = vpack.c.b16 %v2871, %v2870
      %v2956 = vpack.c.b16 %v2873, %v2872
      %v2957 = vpack.c.b16 %v2875, %v2874
      %v2958 = vpack.c.b16 %v2877, %v2876
      %v2959 = vpack.c.b16 %v2879, %v2878
      %v2960 = vpack.c.b16 %v2881, %v2880
      %v2961 = vpack.c.b16 %v2883, %v2882
      %v2962 = vpack.c.b16 %v2885, %v2884
      %v2963 = vpack.c.b16 %v2887, %v2886
      %v2964 = vpack.c.b16 %v2889, %v2888
      %v2965 = vpack.c.b16 %v2891, %v2890
      %v2966 = vpack.c.b16 %v2893, %v2892
      %v2967 = vpack.c.b16 %v2895, %v2894
      %3040 = vmatpush.bf16.msra.mxu0 %v2903
      %3041 = vmatpush.bf16.msra.mxu0 %v2902
      %3042 = vmatpush.bf16.msra.mxu0 %v2901
      %3043 = vmatpush.bf16.msra.mxu0 %v2900
      %3044 = vmatpush.bf16.msra.mxu0 %v2899
      %3045 = vmatpush.bf16.msra.mxu0 %v2898
      %3046 = vmatpush.bf16.msra.mxu0 %v2897
      %3047 = vmatpush.bf16.msra.mxu0 %v2896
      %3048 = vmatmul.bf16.gmra.mxu0 %v2252
      %v3049 = vpop.f32.mrf.mxu0
      %v3050 = vadd.f32 0.0, %v3049
      %v3051 = vpop.f32.mrf.mxu0
      %v3052 = vadd.f32 0.0, %v3051
      %3053 = vmatmul.bf16.gmra.mxu0 %v2253
      %v3054 = vpop.f32.mrf.mxu0
      %v3055 = vadd.f32 0.0, %v3054
      %v3056 = vpop.f32.mrf.mxu0
      %v3057 = vadd.f32 0.0, %v3056
      %3058 = vmatmul.bf16.gmra.mxu0 %v2254
      %v3059 = vpop.f32.mrf.mxu0
      %v3060 = vadd.f32 0.0, %v3059
      %v3061 = vpop.f32.mrf.mxu0
      %v3062 = vadd.f32 0.0, %v3061
      %3063 = vmatmul.bf16.gmra.mxu0 %v2255
      %v3064 = vpop.f32.mrf.mxu0
      %v3065 = vadd.f32 0.0, %v3064
      %v3066 = vpop.f32.mrf.mxu0
      %v3067 = vadd.f32 0.0, %v3066
      %3068 = vmatmul.bf16.gmra.mxu0 %v2256
      %v3069 = vpop.f32.mrf.mxu0
      %v3070 = vadd.f32 0.0, %v3069
      %v3071 = vpop.f32.mrf.mxu0
      %v3072 = vadd.f32 0.0, %v3071
      %3073 = vmatmul.bf16.gmra.mxu0 %v2257
      %v3074 = vpop.f32.mrf.mxu0
      %v3075 = vadd.f32 0.0, %v3074
      %v3076 = vpop.f32.mrf.mxu0
      %v3077 = vadd.f32 0.0, %v3076
      %3078 = vmatmul.bf16.gmra.mxu0 %v2258
      %v3079 = vpop.f32.mrf.mxu0
      %v3080 = vadd.f32 0.0, %v3079
      %v3081 = vpop.f32.mrf.mxu0
      %v3082 = vadd.f32 0.0, %v3081
      %3083 = vmatmul.bf16.gmra.mxu0 %v2259
      %v3084 = vpop.f32.mrf.mxu0
      %v3085 = vadd.f32 0.0, %v3084
      %v3086 = vpop.f32.mrf.mxu0
      %v3087 = vadd.f32 0.0, %v3086
      %3088 = vdwg.mxu0
      %3089 = vmatpush.bf16.msra.mxu0 %v2911
      %3090 = vmatpush.bf16.msra.mxu0 %v2910
      %3091 = vmatpush.bf16.msra.mxu0 %v2909
      %3092 = vmatpush.bf16.msra.mxu0 %v2908
      %3093 = vmatpush.bf16.msra.mxu0 %v2907
      %3094 = vmatpush.bf16.msra.mxu0 %v2906
      %3095 = vmatpush.bf16.msra.mxu0 %v2905
      %3096 = vmatpush.bf16.msra.mxu0 %v2904
      %3097 = vmatmul.bf16.gmra.mxu0 %v2284
      %v3098 = vpop.f32.mrf.mxu0
      %v3099 = vadd.f32 %v3050, %v3098
      %v3100 = vpop.f32.mrf.mxu0
      %v3101 = vadd.f32 %v3052, %v3100
      %3102 = vmatmul.bf16.gmra.mxu0 %v2296
      %v3103 = vpop.f32.mrf.mxu0
      %v3104 = vadd.f32 %v3055, %v3103
      %v3105 = vpop.f32.mrf.mxu0
      %v3106 = vadd.f32 %v3057, %v3105
      %3107 = vmatmul.bf16.gmra.mxu0 %v2308
      %v3108 = vpop.f32.mrf.mxu0
      %v3109 = vadd.f32 %v3060, %v3108
      %v3110 = vpop.f32.mrf.mxu0
      %v3111 = vadd.f32 %v3062, %v3110
      %3112 = vmatmul.bf16.gmra.mxu0 %v2320
      %v3113 = vpop.f32.mrf.mxu0
      %v3114 = vadd.f32 %v3065, %v3113
      %v3115 = vpop.f32.mrf.mxu0
      %v3116 = vadd.f32 %v3067, %v3115
      %3117 = vmatmul.bf16.gmra.mxu0 %v2332
      %v3118 = vpop.f32.mrf.mxu0
      %v3119 = vadd.f32 %v3070, %v3118
      %v3120 = vpop.f32.mrf.mxu0
      %v3121 = vadd.f32 %v3072, %v3120
      %3122 = vmatmul.bf16.gmra.mxu0 %v2344
      %v3123 = vpop.f32.mrf.mxu0
      %v3124 = vadd.f32 %v3075, %v3123
      %v3125 = vpop.f32.mrf.mxu0
      %v3126 = vadd.f32 %v3077, %v3125
      %3127 = vmatmul.bf16.gmra.mxu0 %v2356
      %v3128 = vpop.f32.mrf.mxu0
      %v3129 = vadd.f32 %v3080, %v3128
      %v3130 = vpop.f32.mrf.mxu0
      %v3131 = vadd.f32 %v3082, %v3130
      %3132 = vmatmul.bf16.gmra.mxu0 %v2368
      %v3133 = vpop.f32.mrf.mxu0
      %v3134 = vadd.f32 %v3085, %v3133
      %v3135 = vpop.f32.mrf.mxu0
      %v3136 = vadd.f32 %v3087, %v3135
      %3137 = vdwg.mxu0
      %3138 = vmatpush.bf16.msra.mxu0 %v2919
      %3139 = vmatpush.bf16.msra.mxu0 %v2918
      %3140 = vmatpush.bf16.msra.mxu0 %v2917
      %3141 = vmatpush.bf16.msra.mxu0 %v2916
      %3142 = vmatpush.bf16.msra.mxu0 %v2915
      %3143 = vmatpush.bf16.msra.mxu0 %v2914
      %3144 = vmatpush.bf16.msra.mxu0 %v2913
      %3145 = vmatpush.bf16.msra.mxu0 %v2912
      %3146 = vmatmul.bf16.gmra.mxu0 %v2396
      %v3147 = vpop.f32.mrf.mxu0
      %v3148 = vadd.f32 %v3099, %v3147
      %v3149 = vpop.f32.mrf.mxu0
      %v3150 = vadd.f32 %v3101, %v3149
      %3151 = vmatmul.bf16.gmra.mxu0 %v2399
      %v3152 = vpop.f32.mrf.mxu0
      %v3153 = vadd.f32 %v3104, %v3152
      %v3154 = vpop.f32.mrf.mxu0
      %v3155 = vadd.f32 %v3106, %v3154
      %3156 = vmatmul.bf16.gmra.mxu0 %v2402
      %v3157 = vpop.f32.mrf.mxu0
      %v3158 = vadd.f32 %v3109, %v3157
      %v3159 = vpop.f32.mrf.mxu0
      %v3160 = vadd.f32 %v3111, %v3159
      %3161 = vmatmul.bf16.gmra.mxu0 %v2405
      %v3162 = vpop.f32.mrf.mxu0
      %v3163 = vadd.f32 %v3114, %v3162
      %v3164 = vpop.f32.mrf.mxu0
      %v3165 = vadd.f32 %v3116, %v3164
      %3166 = vmatmul.bf16.gmra.mxu0 %v2408
      %v3167 = vpop.f32.mrf.mxu0
      %v3168 = vadd.f32 %v3119, %v3167
      %v3169 = vpop.f32.mrf.mxu0
      %v3170 = vadd.f32 %v3121, %v3169
      %3171 = vmatmul.bf16.gmra.mxu0 %v2411
      %v3172 = vpop.f32.mrf.mxu0
      %v3173 = vadd.f32 %v3124, %v3172
      %v3174 = vpop.f32.mrf.mxu0
      %v3175 = vadd.f32 %v3126, %v3174
      %3176 = vmatmul.bf16.gmra.mxu0 %v2414
      %v3177 = vpop.f32.mrf.mxu0
      %v3178 = vadd.f32 %v3129, %v3177
      %v3179 = vpop.f32.mrf.mxu0
      %v3180 = vadd.f32 %v3131, %v3179
      %3181 = vmatmul.bf16.gmra.mxu0 %v2417
      %v3182 = vpop.f32.mrf.mxu0
      %v3183 = vadd.f32 %v3134, %v3182
      %v3184 = vpop.f32.mrf.mxu0
      %v3185 = vadd.f32 %v3136, %v3184
      %3186 = vdwg.mxu0
      %3187 = vmatpush.bf16.msra.mxu0 %v2927
      %3188 = vmatpush.bf16.msra.mxu0 %v2926
      %3189 = vmatpush.bf16.msra.mxu0 %v2925
      %3190 = vmatpush.bf16.msra.mxu0 %v2924
      %3191 = vmatpush.bf16.msra.mxu0 %v2923
      %3192 = vmatpush.bf16.msra.mxu0 %v2922
      %3193 = vmatpush.bf16.msra.mxu0 %v2921
      %3194 = vmatpush.bf16.msra.mxu0 %v2920
      %3195 = vmatmul.bf16.gmra.mxu0 %v2253
      %v3196 = vpop.f32.mrf.mxu0
      %v3197 = vadd.f32 %v3148, %v3196
      %v3198 = vpop.f32.mrf.mxu0
      %v3199 = vadd.f32 %v3150, %v3198
      %3200 = vmatmul.bf16.gmra.mxu0 %v2254
      %v3201 = vpop.f32.mrf.mxu0
      %v3202 = vadd.f32 %v3153, %v3201
      %v3203 = vpop.f32.mrf.mxu0
      %v3204 = vadd.f32 %v3155, %v3203
      %3205 = vmatmul.bf16.gmra.mxu0 %v2255
      %v3206 = vpop.f32.mrf.mxu0
      %v3207 = vadd.f32 %v3158, %v3206
      %v3208 = vpop.f32.mrf.mxu0
      %v3209 = vadd.f32 %v3160, %v3208
      %3210 = vmatmul.bf16.gmra.mxu0 %v2256
      %v3211 = vpop.f32.mrf.mxu0
      %v3212 = vadd.f32 %v3163, %v3211
      %v3213 = vpop.f32.mrf.mxu0
      %v3214 = vadd.f32 %v3165, %v3213
      %3215 = vmatmul.bf16.gmra.mxu0 %v2257
      %v3216 = vpop.f32.mrf.mxu0
      %v3217 = vadd.f32 %v3168, %v3216
      %v3218 = vpop.f32.mrf.mxu0
      %v3219 = vadd.f32 %v3170, %v3218
      %3220 = vmatmul.bf16.gmra.mxu0 %v2258
      %v3221 = vpop.f32.mrf.mxu0
      %v3222 = vadd.f32 %v3173, %v3221
      %v3223 = vpop.f32.mrf.mxu0
      %v3224 = vadd.f32 %v3175, %v3223
      %3225 = vmatmul.bf16.gmra.mxu0 %v2259
      %v3226 = vpop.f32.mrf.mxu0
      %v3227 = vadd.f32 %v3178, %v3226
      %v3228 = vpop.f32.mrf.mxu0
      %v3229 = vadd.f32 %v3180, %v3228
      %3230 = vmatmul.bf16.gmra.mxu0 %v2260
      %v3231 = vpop.f32.mrf.mxu0
      %v3232 = vadd.f32 %v3183, %v3231
      %v3233 = vpop.f32.mrf.mxu0
      %v3234 = vadd.f32 %v3185, %v3233
      %3235 = vdwg.mxu0
      %3236 = vmatpush.bf16.msra.mxu0 %v2935
      %3237 = vmatpush.bf16.msra.mxu0 %v2934
      %3238 = vmatpush.bf16.msra.mxu0 %v2933
      %3239 = vmatpush.bf16.msra.mxu0 %v2932
      %3240 = vmatpush.bf16.msra.mxu0 %v2931
      %3241 = vmatpush.bf16.msra.mxu0 %v2930
      %3242 = vmatpush.bf16.msra.mxu0 %v2929
      %3243 = vmatpush.bf16.msra.mxu0 %v2928
      %3244 = vmatmul.bf16.gmra.mxu0 %v2296
      %v3245 = vpop.f32.mrf.mxu0
      %v3246 = vadd.f32 %v3197, %v3245
      %v3247 = vpop.f32.mrf.mxu0
      %v3248 = vadd.f32 %v3199, %v3247
      %3249 = vmatmul.bf16.gmra.mxu0 %v2308
      %v3250 = vpop.f32.mrf.mxu0
      %v3251 = vadd.f32 %v3202, %v3250
      %v3252 = vpop.f32.mrf.mxu0
      %v3253 = vadd.f32 %v3204, %v3252
      %3254 = vmatmul.bf16.gmra.mxu0 %v2320
      %v3255 = vpop.f32.mrf.mxu0
      %v3256 = vadd.f32 %v3207, %v3255
      %v3257 = vpop.f32.mrf.mxu0
      %v3258 = vadd.f32 %v3209, %v3257
      %3259 = vmatmul.bf16.gmra.mxu0 %v2332
      %v3260 = vpop.f32.mrf.mxu0
      %v3261 = vadd.f32 %v3212, %v3260
      %v3262 = vpop.f32.mrf.mxu0
      %v3263 = vadd.f32 %v3214, %v3262
      %3264 = vmatmul.bf16.gmra.mxu0 %v2344
      %v3265 = vpop.f32.mrf.mxu0
      %v3266 = vadd.f32 %v3217, %v3265
      %v3267 = vpop.f32.mrf.mxu0
      %v3268 = vadd.f32 %v3219, %v3267
      %3269 = vmatmul.bf16.gmra.mxu0 %v2356
      %v3270 = vpop.f32.mrf.mxu0
      %v3271 = vadd.f32 %v3222, %v3270
      %v3272 = vpop.f32.mrf.mxu0
      %v3273 = vadd.f32 %v3224, %v3272
      %3274 = vmatmul.bf16.gmra.mxu0 %v2368
      %v3275 = vpop.f32.mrf.mxu0
      %v3276 = vadd.f32 %v3227, %v3275
      %v3277 = vpop.f32.mrf.mxu0
      %v3278 = vadd.f32 %v3229, %v3277
      %3279 = vmatmul.bf16.gmra.mxu0 %v2437
      %v3280 = vpop.f32.mrf.mxu0
      %v3281 = vadd.f32 %v3232, %v3280
      %v3282 = vpop.f32.mrf.mxu0
      %v3283 = vadd.f32 %v3234, %v3282
      %3284 = vdwg.mxu0
      %3285 = vmatpush.bf16.msra.mxu0 %v2943
      %3286 = vmatpush.bf16.msra.mxu0 %v2942
      %3287 = vmatpush.bf16.msra.mxu0 %v2941
      %3288 = vmatpush.bf16.msra.mxu0 %v2940
      %3289 = vmatpush.bf16.msra.mxu0 %v2939
      %3290 = vmatpush.bf16.msra.mxu0 %v2938
      %3291 = vmatpush.bf16.msra.mxu0 %v2937
      %3292 = vmatpush.bf16.msra.mxu0 %v2936
      %3293 = vmatmul.bf16.gmra.mxu0 %v2399
      %v3294 = vpop.f32.mrf.mxu0
      %v3295 = vadd.f32 %v3246, %v3294
      %v3296 = vpop.f32.mrf.mxu0
      %v3297 = vadd.f32 %v3248, %v3296
      %3298 = vmatmul.bf16.gmra.mxu0 %v2402
      %v3299 = vpop.f32.mrf.mxu0
      %v3300 = vadd.f32 %v3251, %v3299
      %v3301 = vpop.f32.mrf.mxu0
      %v3302 = vadd.f32 %v3253, %v3301
      %3303 = vmatmul.bf16.gmra.mxu0 %v2405
      %v3304 = vpop.f32.mrf.mxu0
      %v3305 = vadd.f32 %v3256, %v3304
      %v3306 = vpop.f32.mrf.mxu0
      %v3307 = vadd.f32 %v3258, %v3306
      %3308 = vmatmul.bf16.gmra.mxu0 %v2408
      %v3309 = vpop.f32.mrf.mxu0
      %v3310 = vadd.f32 %v3261, %v3309
      %v3311 = vpop.f32.mrf.mxu0
      %v3312 = vadd.f32 %v3263, %v3311
      %3313 = vmatmul.bf16.gmra.mxu0 %v2411
      %v3314 = vpop.f32.mrf.mxu0
      %v3315 = vadd.f32 %v3266, %v3314
      %v3316 = vpop.f32.mrf.mxu0
      %v3317 = vadd.f32 %v3268, %v3316
      %3318 = vmatmul.bf16.gmra.mxu0 %v2414
      %v3319 = vpop.f32.mrf.mxu0
      %v3320 = vadd.f32 %v3271, %v3319
      %v3321 = vpop.f32.mrf.mxu0
      %v3322 = vadd.f32 %v3273, %v3321
      %3323 = vmatmul.bf16.gmra.mxu0 %v2417
      %v3324 = vpop.f32.mrf.mxu0
      %v3325 = vadd.f32 %v3276, %v3324
      %v3326 = vpop.f32.mrf.mxu0
      %v3327 = vadd.f32 %v3278, %v3326
      %3328 = vmatmul.bf16.gmra.mxu0 %v2443
      %v3329 = vpop.f32.mrf.mxu0
      %v3330 = vadd.f32 %v3281, %v3329
      %v3331 = vpop.f32.mrf.mxu0
      %v3332 = vadd.f32 %v3283, %v3331
      %3333 = vdwg.mxu0
      %3334 = vmatpush.bf16.msra.mxu0 %v2951
      %3335 = vmatpush.bf16.msra.mxu0 %v2950
      %3336 = vmatpush.bf16.msra.mxu0 %v2949
      %3337 = vmatpush.bf16.msra.mxu0 %v2948
      %3338 = vmatpush.bf16.msra.mxu0 %v2947
      %3339 = vmatpush.bf16.msra.mxu0 %v2946
      %3340 = vmatpush.bf16.msra.mxu0 %v2945
      %3341 = vmatpush.bf16.msra.mxu0 %v2944
      %3342 = vmatmul.bf16.gmra.mxu0 %v2254
      %v3343 = vpop.f32.mrf.mxu0
      %v3344 = vadd.f32 %v3295, %v3343
      %v3345 = vpop.f32.mrf.mxu0
      %v3346 = vadd.f32 %v3297, %v3345
      %3347 = vmatmul.bf16.gmra.mxu0 %v2255
      %v3348 = vpop.f32.mrf.mxu0
      %v3349 = vadd.f32 %v3300, %v3348
      %v3350 = vpop.f32.mrf.mxu0
      %v3351 = vadd.f32 %v3302, %v3350
      %3352 = vmatmul.bf16.gmra.mxu0 %v2256
      %v3353 = vpop.f32.mrf.mxu0
      %v3354 = vadd.f32 %v3305, %v3353
      %v3355 = vpop.f32.mrf.mxu0
      %v3356 = vadd.f32 %v3307, %v3355
      %3357 = vmatmul.bf16.gmra.mxu0 %v2257
      %v3358 = vpop.f32.mrf.mxu0
      %v3359 = vadd.f32 %v3310, %v3358
      %v3360 = vpop.f32.mrf.mxu0
      %v3361 = vadd.f32 %v3312, %v3360
      %3362 = vmatmul.bf16.gmra.mxu0 %v2258
      %v3363 = vpop.f32.mrf.mxu0
      %v3364 = vadd.f32 %v3315, %v3363
      %v3365 = vpop.f32.mrf.mxu0
      %v3366 = vadd.f32 %v3317, %v3365
      %3367 = vmatmul.bf16.gmra.mxu0 %v2259
      %v3368 = vpop.f32.mrf.mxu0
      %v3369 = vadd.f32 %v3320, %v3368
      %v3370 = vpop.f32.mrf.mxu0
      %v3371 = vadd.f32 %v3322, %v3370
      %3372 = vmatmul.bf16.gmra.mxu0 %v2260
      %v3373 = vpop.f32.mrf.mxu0
      %v3374 = vadd.f32 %v3325, %v3373
      %v3375 = vpop.f32.mrf.mxu0
      %v3376 = vadd.f32 %v3327, %v3375
      %3377 = vmatmul.bf16.gmra.mxu0 %v2261
      %v3378 = vpop.f32.mrf.mxu0
      %v3379 = vadd.f32 %v3330, %v3378
      %v3380 = vpop.f32.mrf.mxu0
      %v3381 = vadd.f32 %v3332, %v3380
      %3382 = vdwg.mxu0
      %3383 = vmatpush.bf16.msra.mxu0 %v2959
      %3384 = vmatpush.bf16.msra.mxu0 %v2958
      %3385 = vmatpush.bf16.msra.mxu0 %v2957
      %3386 = vmatpush.bf16.msra.mxu0 %v2956
      %3387 = vmatpush.bf16.msra.mxu0 %v2955
      %3388 = vmatpush.bf16.msra.mxu0 %v2954
      %3389 = vmatpush.bf16.msra.mxu0 %v2953
      %3390 = vmatpush.bf16.msra.mxu0 %v2952
      %3391 = vmatmul.bf16.gmra.mxu0 %v2308
      %v3392 = vpop.f32.mrf.mxu0
      %v3393 = vadd.f32 %v3344, %v3392
      %v3394 = vpop.f32.mrf.mxu0
      %v3395 = vadd.f32 %v3346, %v3394
      %3396 = vmatmul.bf16.gmra.mxu0 %v2320
      %v3397 = vpop.f32.mrf.mxu0
      %v3398 = vadd.f32 %v3349, %v3397
      %v3399 = vpop.f32.mrf.mxu0
      %v3400 = vadd.f32 %v3351, %v3399
      %3401 = vmatmul.bf16.gmra.mxu0 %v2332
      %v3402 = vpop.f32.mrf.mxu0
      %v3403 = vadd.f32 %v3354, %v3402
      %v3404 = vpop.f32.mrf.mxu0
      %v3405 = vadd.f32 %v3356, %v3404
      %3406 = vmatmul.bf16.gmra.mxu0 %v2344
      %v3407 = vpop.f32.mrf.mxu0
      %v3408 = vadd.f32 %v3359, %v3407
      %v3409 = vpop.f32.mrf.mxu0
      %v3410 = vadd.f32 %v3361, %v3409
      %3411 = vmatmul.bf16.gmra.mxu0 %v2356
      %v3412 = vpop.f32.mrf.mxu0
      %v3413 = vadd.f32 %v3364, %v3412
      %v3414 = vpop.f32.mrf.mxu0
      %v3415 = vadd.f32 %v3366, %v3414
      %3416 = vmatmul.bf16.gmra.mxu0 %v2368
      %v3417 = vpop.f32.mrf.mxu0
      %v3418 = vadd.f32 %v3369, %v3417
      %v3419 = vpop.f32.mrf.mxu0
      %v3420 = vadd.f32 %v3371, %v3419
      %3421 = vmatmul.bf16.gmra.mxu0 %v2437
      %v3422 = vpop.f32.mrf.mxu0
      %v3423 = vadd.f32 %v3374, %v3422
      %v3424 = vpop.f32.mrf.mxu0
      %v3425 = vadd.f32 %v3376, %v3424
      %3426 = vmatmul.bf16.gmra.mxu0 %v2456
      %v3427 = vpop.f32.mrf.mxu0
      %v3428 = vadd.f32 %v3379, %v3427
      %v3429 = vpop.f32.mrf.mxu0
      %v3430 = vadd.f32 %v3381, %v3429
      %3431 = vdwg.mxu0
      %3432 = vmatpush.bf16.msra.mxu0 %v2967
      %3433 = vmatpush.bf16.msra.mxu0 %v2966
      %3434 = vmatpush.bf16.msra.mxu0 %v2965
      %3435 = vmatpush.bf16.msra.mxu0 %v2964
      %3436 = vmatpush.bf16.msra.mxu0 %v2963
      %3437 = vmatpush.bf16.msra.mxu0 %v2962
      %3438 = vmatpush.bf16.msra.mxu0 %v2961
      %3439 = vmatpush.bf16.msra.mxu0 %v2960
      %3440 = vmatmul.bf16.gmra.mxu0 %v2402
      %v3441 = vpop.f32.mrf.mxu0
      %v3442 = vadd.f32 %v3393, %v3441
      %v3443 = vpop.f32.mrf.mxu0
      %v3444 = vadd.f32 %v3395, %v3443
      %3445 = vmatmul.bf16.gmra.mxu0 %v2405
      %v3446 = vpop.f32.mrf.mxu0
      %v3447 = vadd.f32 %v3398, %v3446
      %v3448 = vpop.f32.mrf.mxu0
      %v3449 = vadd.f32 %v3400, %v3448
      %3450 = vmatmul.bf16.gmra.mxu0 %v2408
      %v3451 = vpop.f32.mrf.mxu0
      %v3452 = vadd.f32 %v3403, %v3451
      %v3453 = vpop.f32.mrf.mxu0
      %v3454 = vadd.f32 %v3405, %v3453
      %3455 = vmatmul.bf16.gmra.mxu0 %v2411
      %v3456 = vpop.f32.mrf.mxu0
      %v3457 = vadd.f32 %v3408, %v3456
      %v3458 = vpop.f32.mrf.mxu0
      %v3459 = vadd.f32 %v3410, %v3458
      %3460 = vmatmul.bf16.gmra.mxu0 %v2414
      %v3461 = vpop.f32.mrf.mxu0
      %v3462 = vadd.f32 %v3413, %v3461
      %v3463 = vpop.f32.mrf.mxu0
      %v3464 = vadd.f32 %v3415, %v3463
      %3465 = vmatmul.bf16.gmra.mxu0 %v2417
      %v3466 = vpop.f32.mrf.mxu0
      %v3467 = vadd.f32 %v3418, %v3466
      %v3468 = vpop.f32.mrf.mxu0
      %v3469 = vadd.f32 %v3420, %v3468
      %3470 = vmatmul.bf16.gmra.mxu0 %v2443
      %v3471 = vpop.f32.mrf.mxu0
      %v3472 = vadd.f32 %v3423, %v3471
      %v3473 = vpop.f32.mrf.mxu0
      %v3474 = vadd.f32 %v3425, %v3473
      %3475 = vmatmul.bf16.gmra.mxu0 %v2462
      %v3476 = vpop.f32.mrf.mxu0
      %v3477 = vadd.f32 %v3428, %v3476
      %v3478 = vpop.f32.mrf.mxu0
      %v3479 = vadd.f32 %v3430, %v3478
      %3480 = vdwg.mxu0
      %v3481 = vld [vmem:[%s3 + $0x2] sm:$0x1]
      %v3482 = vld [vmem:[%s3 + $0x3] sm:$0x1]
      %v3483 = vperm.slane %v3481, 0
      %v3484 = vmul.f32 %v3442, %v3483
      %v3485 = vmul.f32 %v3444, %v3483
      %v3486 = vmul.f32 %v3447, %v3483
      %v3487 = vmul.f32 %v3449, %v3483
      %v3488 = vmul.f32 %v3452, %v3483
      %v3489 = vmul.f32 %v3454, %v3483
      %v3490 = vmul.f32 %v3457, %v3483
      %v3491 = vmul.f32 %v3459, %v3483
      %v3492 = vmul.f32 %v3462, %v3483
      %v3493 = vmul.f32 %v3464, %v3483
      %v3494 = vmul.f32 %v3467, %v3483
      %v3495 = vmul.f32 %v3469, %v3483
      %v3496 = vmul.f32 %v3472, %v3483
      %v3497 = vmul.f32 %v3474, %v3483
      %v3498 = vmul.f32 %v3477, %v3483
      %v3499 = vmul.f32 %v3479, %v3483
      %v3500 = vperm.slane %v3482, 0
      %v3501 = vadd.f32 %v3484, %v3500
      %v3502 = vadd.f32 %v3485, %v3500
      %v3503 = vadd.f32 %v3486, %v3500
      %v3504 = vadd.f32 %v3487, %v3500
      %v3505 = vadd.f32 %v3488, %v3500
      %v3506 = vadd.f32 %v3489, %v3500
      %v3507 = vadd.f32 %v3490, %v3500
      %v3508 = vadd.f32 %v3491, %v3500
      %v3509 = vadd.f32 %v3492, %v3500
      %v3510 = vadd.f32 %v3493, %v3500
      %v3511 = vadd.f32 %v3494, %v3500
      %v3512 = vadd.f32 %v3495, %v3500
      %v3513 = vadd.f32 %v3496, %v3500
      %v3514 = vadd.f32 %v3497, %v3500
      %v3515 = vadd.f32 %v3498, %v3500
      %v3516 = vadd.f32 %v3499, %v3500
      %s3517 = sadd.s32 %s224, 2
      %s3518 = smul.u32 %s3517, 24
      %s3519 = scalar_lea.vmem %s211, %s3518
      %v3520 = vld [vmem:[%s3519 + $0x1] sm:$0xff]
      %v3521 = vld [vmem:[%s3519 + $0x9] sm:$0xff]
      %v3522 = vld [vmem:[%s3519 + $0x19] sm:$0xff]
      %v3523 = vld [vmem:[%s3519 + $0x21] sm:$0xff]
      %v3524 = vld [vmem:[%s3519 + $0x31] sm:$0xff]
      %v3525 = vld [vmem:[%s3519 + $0x39] sm:$0xff]
      %v3526 = vld [vmem:[%s3519 + $0x49] sm:$0xff]
      %v3527 = vld [vmem:[%s3519 + $0x51] sm:$0xff]
      %v3528 = vld [vmem:[%s3519 + $0x61] sm:$0xff]
      %v3529 = vld [vmem:[%s3519 + $0x69] sm:$0xff]
      %v3530 = vld [vmem:[%s3519 + $0x79] sm:$0xff]
      %v3531 = vld [vmem:[%s3519 + $0x81] sm:$0xff]
      %v3532 = vld [vmem:[%s3519 + $0x91] sm:$0xff]
      %v3533 = vld [vmem:[%s3519 + $0x99] sm:$0xff]
      %v3534 = vld [vmem:[%s3519 + $0xa9] sm:$0xff]
      %v3535 = vld [vmem:[%s3519 + $0xb1] sm:$0xff]
      %v3536 = vadd.f32 %v3501, %v3520
      %v3537 = vadd.f32 %v3502, %v3521
      %v3538 = vadd.f32 %v3503, %v3522
      %v3539 = vadd.f32 %v3504, %v3523
      %v3540 = vadd.f32 %v3505, %v3524
      %v3541 = vadd.f32 %v3506, %v3525
      %v3542 = vadd.f32 %v3507, %v3526
      %v3543 = vadd.f32 %v3508, %v3527
      %v3544 = vadd.f32 %v3509, %v3528
      %v3545 = vadd.f32 %v3510, %v3529
      %v3546 = vadd.f32 %v3511, %v3530
      %v3547 = vadd.f32 %v3512, %v3531
      %v3548 = vadd.f32 %v3513, %v3532
      %v3549 = vadd.f32 %v3514, %v3533
      %v3550 = vadd.f32 %v3515, %v3534
      %v3551 = vadd.f32 %v3516, %v3535
      %v3552 = vmax.f32 %v3536, 0.0
      %v3553 = vmax.f32 %v3537, 0.0
      %v3554 = vmax.f32 %v3538, 0.0
      %v3555 = vmax.f32 %v3539, 0.0
      %v3556 = vmax.f32 %v3540, 0.0
      %v3557 = vmax.f32 %v3541, 0.0
      %v3558 = vmax.f32 %v3542, 0.0
      %v3559 = vmax.f32 %v3543, 0.0
      %v3560 = vmax.f32 %v3544, 0.0
      %v3561 = vmax.f32 %v3545, 0.0
      %v3562 = vmax.f32 %v3546, 0.0
      %v3563 = vmax.f32 %v3547, 0.0
      %v3564 = vmax.f32 %v3548, 0.0
      %v3565 = vmax.f32 %v3549, 0.0
      %v3566 = vmax.f32 %v3550, 0.0
      %v3567 = vmax.f32 %v3551, 0.0
      %3568 = vst [vmem:[%s221] sm:$0xff] %v3552
      %3569 = vst [vmem:[%s221 + $0x8] sm:$0xff] %v3553
      %3570 = vst [vmem:[%s221 + $0x10] sm:$0xff] %v3554
      %3571 = vst [vmem:[%s221 + $0x18] sm:$0xff] %v3555
      %3572 = vst [vmem:[%s221 + $0x20] sm:$0xff] %v3556
      %3573 = vst [vmem:[%s221 + $0x28] sm:$0xff] %v3557
      %3574 = vst [vmem:[%s221 + $0x30] sm:$0xff] %v3558
      %3575 = vst [vmem:[%s221 + $0x38] sm:$0xff] %v3559
      %3576 = vst [vmem:[%s221 + $0x40] sm:$0xff] %v3560
      %3577 = vst [vmem:[%s221 + $0x48] sm:$0xff] %v3561
      %3578 = vst [vmem:[%s221 + $0x50] sm:$0xff] %v3562
      %3579 = vst [vmem:[%s221 + $0x58] sm:$0xff] %v3563
      %3580 = vst [vmem:[%s221 + $0x60] sm:$0xff] %v3564
      %3581 = vst [vmem:[%s221 + $0x68] sm:$0xff] %v3565
      %3582 = vst [vmem:[%s221 + $0x70] sm:$0xff] %v3566
      %3583 = vst [vmem:[%s221 + $0x78] sm:$0xff] %v3567
      %s3584 = smul.u32 8, %s20
      %p3585 = scmp.lt.s32.totalorder %s19, 1
      %s3586 = scalar_select %p3585, %s19, 1
      %p3587 = scmp.lt.s32.totalorder %s3584, 15
      %s3588 = scalar_select %p3587, %s3584, 15
      %s3589 = smul.addr %s3588, 2
      %s3590 = smul.addr %s3586, 32
      %s3591 = sadd.s32 %s3589, %s3590
      %s3592 = smul.addr %s3591, 8
      %s3593 = scalar_lea.vmem %s4, %s3592
      // Predicated region
      $region37: #{basic_block_pallas.1} parent=35 // pred_check
        %p3594 = pneg %p136
      $region38: #{basic_block_pallas.1} parent=35 // pred_check_branch
        %3596 = sbr.rel (%p3594) target = $region40
      $region39: #{basic_block_pallas.1} parent=35 // pred_region
        %s3597 = smul.u32 8, %s20
      $region40: #{basic_block_pallas.1} parent=35 // pred_fallthru
        _
    $region36: #{basic_block_pallas.1} parent=5 // pred_fallthru
      _
    %p3598 = scmp.le.s32.totalorder 2, %s10
    // Predicated region
    $region41: #{basic_block_pallas.1} parent=5 // pred_check
      %p3599 = pneg %p3598
    $region42: #{basic_block_pallas.1} parent=5 // pred_check_branch
      %3601 = sbr.rel (%p3599) target = $region44
    $region43: #{basic_block_pallas.1} parent=5 // pred_region
      %s3602 = ssub.s32 %s10, 2
      // Predicated region
      $region45: #{basic_block_pallas.1} parent=43 // pred_check
        %p3603 = pneg %p142
      $region46: #{basic_block_pallas.1} parent=43 // pred_check_branch
        %3605 = sbr.rel (%p3603) target = $region48
      $region47: #{basic_block_pallas.1} parent=43 // pred_region
        %s3606 = smul.u32 8, %s22
        %p3607 = scmp.lt.s32.totalorder %s21, 1
        %s3608 = scalar_select %p3607, %s21, 1
        %p3609 = scmp.lt.s32.totalorder %s3606, 15
        %s3610 = scalar_select %p3609, %s3606, 15
        %s3611 = smul.addr %s3610, 2
        %s3612 = smul.addr %s3608, 32
        %s3613 = sadd.s32 %s3611, %s3612
        %s3614 = smul.addr %s3613, 8
        %s3615 = scalar_lea.vmem %s4, %s3614
      $region48: #{basic_block_pallas.1} parent=43 // pred_fallthru
        _
    $region44: #{basic_block_pallas.1} parent=5 // pred_fallthru
      _
  $region6: #{basic_block_pallas.1} parent=0 // loop_footer
    %s14 = sadd.s32 1, %s10
  $region7: #{basic_block_pallas.1} parent=0 // loop_footer_branch
    %9 = sbr.rel target = $region3
  $region8: #{basic_block_pallas.1} parent=0 // loop_exit
    _

</llo_original>
